<compile_context>
chip_gen: v6e
topology: v6e:2x2x1
jax: 0.10.0
libtpu: 0.0.40
codegen_flags: <defaults>
</compile_context>

<pallas_src>
import functools

import jax
import jax.numpy as jnp
import numpy as np
from jax.experimental import pallas as pl
from jax.experimental.pallas import tpu as pltpu


def _supcon_kernel(q_ref, qa_ref, lbl_ref, tgt_ref, invc_ref, invcm1_ref,
                   out_ref, m_sc, l_sc, spos_sc, npos_sc, *, n_valid):
    i = pl.program_id(0)          # B-tile index (parallel)
    k = pl.program_id(1)          # N-tile index (reduction)
    tb = q_ref.shape[0]
    tn = qa_ref.shape[0]

    @pl.when(k == 0)
    def _():
        m_sc[...] = jnp.full(m_sc.shape, -jnp.inf, dtype=m_sc.dtype)
        l_sc[...] = jnp.zeros(l_sc.shape, dtype=l_sc.dtype)
        spos_sc[...] = jnp.zeros(spos_sc.shape, dtype=spos_sc.dtype)
        npos_sc[...] = jnp.zeros(npos_sc.shape, dtype=npos_sc.dtype)

    # logits tile (tb, tn) = (q / T) @ q_all^T   -- contract feature dim (MXU).
    logits = jax.lax.dot_general(
        q_ref[...], qa_ref[...], (((1,), (1,)), ((), ())),
        preferred_element_type=jnp.float32)

    # Build masks in-register from global row/col indices + label/target vectors.
    row_ids = i * tb + jax.lax.broadcasted_iota(jnp.int32, (tb, tn), 0)
    col_ids = k * tn + jax.lax.broadcasted_iota(jnp.int32, (tb, tn), 1)
    labels_row = lbl_ref[...]        # (tb, 1)  int32  (-2 on padded rows)
    targets_col = tgt_ref[...]       # (1, tn)  int32  (-1 on padded cols)
    inv_c_col = invc_ref[...]        # (1, tn)  f32    1 / count        (1 on padded cols)
    inv_cm1_col = invcm1_ref[...]    # (1, tn)  f32    1 / (count - 1)  (0 where count == 1)

    not_self = col_ids != row_ids
    valid_col = col_ids < n_valid
    lmask_b = jnp.logical_and(not_self, valid_col)
    lmask = lmask_b.astype(jnp.float32)                         # logits_mask
    pos_b = jnp.logical_and(labels_row == targets_col, lmask_b)
    pos = pos_b.astype(jnp.float32)

    # per-instance weight w = logits_mask / (count - mask)
    #   mask == 1 -> 1 / (count - 1)   (count >= 2 whenever mask can be 1)
    #   mask == 0 -> 1 / count
    # Precomputed reciprocals: no divide in the (tb, tn) inner loop.
    w = jnp.where(pos_b, inv_cm1_col, inv_c_col) * lmask

    # Online softmax update over the column axis.
    m_prev = m_sc[...]
    m_new = jnp.maximum(m_prev, jnp.max(logits, axis=1, keepdims=True))
    alpha = jnp.exp(m_prev - m_new)
    p = jnp.exp(logits - m_new)
    l_sc[...] = alpha * l_sc[...] + jnp.sum(w * p, axis=1, keepdims=True)
    m_sc[...] = m_new
    spos_sc[...] += jnp.sum(pos * logits, axis=1, keepdims=True)
    npos_sc[...] += jnp.sum(pos, axis=1, keepdims=True)

    @pl.when(k == pl.num_programs(1) - 1)
    def _():
        # Every real row has >= 1 positive (its own class prototype); the
        # maximum only guards padded rows, which are dropped in the wrapper.
        n_pos = jnp.maximum(npos_sc[...], 1.0)
        mean_log_prob_pos = spos_sc[...] / n_pos - m_sc[...] - jnp.log(l_sc[...])
        out_ref[...] = -mean_log_prob_pos


def _round_up(x, m):
    return ((x + m - 1) // m) * m


def _pick_tile(size, cap):
    aligned = _round_up(max(size, 1), 128)
    if cap > 128 and aligned % cap == 0:
        return cap, aligned
    return 128, aligned


def _tile_caps():
    # v5e MXU is 4x128x128 -> 128-wide tiles already saturate it;
    # v6e / v7x MXU is 2x256x256 -> prefer 256-wide tiles.
    try:
        kind = jax.devices()[0].device_kind.lower()
    except Exception:
        kind = ""
    if "v5 lite" in kind or "v5e" in kind or "v5litepod" in kind:
        return 128, 128
    return 256, 256


def supcon_p_loss(q, labels, prototypes, *, temperature=0.07, num_classes=5,
                  matmul_dtype=jnp.bfloat16):
    """Pallas implementation of SupConPLoss.forward (returns a scalar loss)."""
    B, D = q.shape
    C = num_classes
    N = B + C

    cap_b, cap_n = _tile_caps()
    tile_b, B_pad = _pick_tile(B, cap_b)
    tile_n, N_pad = _pick_tile(N, cap_n)
    D_pad = _round_up(D, 128)

    # ---- tiny O(B + C) glue in plain JAX (no (B, N) tensors) ----
    labels = labels.astype(jnp.int32)
    targets = jnp.concatenate([labels, jnp.arange(C, dtype=jnp.int32)], axis=0)   # (N,)
    cls_count = jnp.sum(jax.nn.one_hot(targets, C, dtype=jnp.float32), axis=0)    # (C,)
    col_counts = cls_count[targets]                                               # (N,) >= 1
    inv_counts = 1.0 / col_counts
    inv_counts_m1 = jnp.where(col_counts > 1.0, 1.0 / (col_counts - 1.0), 0.0)

    inv_t = jnp.float32(1.0 / temperature)
    q32 = q.astype(jnp.float32)
    q_all32 = jnp.concatenate([q32, prototypes.astype(jnp.float32)], axis=0)      # (N, D)

    # Zero-pad to lane/sublane-dense shapes; fold 1/T into the query rows.
    q_p = jnp.zeros((B_pad, D_pad), matmul_dtype).at[:B, :D].set(
        (q32 * inv_t).astype(matmul_dtype))
    qa_p = jnp.zeros((N_pad, D_pad), matmul_dtype).at[:N, :D].set(
        q_all32.astype(matmul_dtype))
    lbl_p = jnp.full((B_pad, 1), -2, jnp.int32).at[:B, 0].set(labels)
    tgt_p = jnp.full((1, N_pad), -1, jnp.int32).at[0, :N].set(targets)
    invc_p = jnp.ones((1, N_pad), jnp.float32).at[0, :N].set(inv_counts)
    invcm1_p = jnp.zeros((1, N_pad), jnp.float32).at[0, :N].set(inv_counts_m1)

    grid = (B_pad // tile_b, N_pad // tile_n)
    itemsize = jnp.dtype(matmul_dtype).itemsize
    cost = pl.CostEstimate(
        flops=2 * B_pad * N_pad * D_pad,
        transcendentals=B_pad * N_pad + 2 * B_pad,
        bytes_accessed=(B_pad * D_pad + N_pad * D_pad) * itemsize
        + (B_pad + 3 * N_pad) * 4 + B_pad * 4)

    kernel = functools.partial(_supcon_kernel, n_valid=N)
    per_row = pl.pallas_call(
        kernel,
        out_shape=jax.ShapeDtypeStruct((B_pad, 1), jnp.float32),
        grid_spec=pltpu.PrefetchScalarGridSpec(
            num_scalar_prefetch=0,
            grid=grid,
            in_specs=[
                pl.BlockSpec((tile_b, D_pad), lambda i, k: (i, 0)),   # q: resident over k
                pl.BlockSpec((tile_n, D_pad), lambda i, k: (k, 0)),   # q_all: streamed
                pl.BlockSpec((tile_b, 1), lambda i, k: (i, 0)),       # row labels
                pl.BlockSpec((1, tile_n), lambda i, k: (0, k)),       # col targets
                pl.BlockSpec((1, tile_n), lambda i, k: (0, k)),       # 1/count per col
                pl.BlockSpec((1, tile_n), lambda i, k: (0, k)),       # 1/(count-1) per col
            ],
            out_specs=pl.BlockSpec((tile_b, 1), lambda i, k: (i, 0)),
            scratch_shapes=[pltpu.VMEM((tile_b, 1), jnp.float32)] * 4,
        ),
        compiler_params=pltpu.CompilerParams(
            dimension_semantics=("parallel", "arbitrary")),
        cost_estimate=cost,
    )(q_p, qa_p, lbl_p, tgt_p, invc_p, invcm1_p)

    # Padded rows are excluded from the mean.
    return jnp.mean(per_row[:B, 0])


def _reference_loss(q, labels, prototypes, temperature=0.07, num_classes=5):
    """Pure-JAX mirror of the PyTorch forward (verification only)."""
    B = q.shape[0]
    C = num_classes
    targets = jnp.concatenate([labels.astype(jnp.int32), jnp.arange(C, dtype=jnp.int32)])
    counts = jnp.sum(jax.nn.one_hot(targets, C, dtype=jnp.float32), axis=0)
    mask = (labels[:, None] == targets[None, :]).astype(jnp.float32)
    logits_mask = jnp.ones((B, B + C), jnp.float32).at[jnp.arange(B), jnp.arange(B)].set(0.0)
    mask = mask * logits_mask
    q_all = jnp.concatenate([q, prototypes], axis=0)
    logits = (q @ q_all.T) / temperature
    logits = logits - jnp.max(logits, axis=1, keepdims=True)
    exp_logits = jnp.exp(logits) * logits_mask
    per_ins_weight = counts[targets][None, :] - mask
    exp_logits_sum = jnp.sum(exp_logits / per_ins_weight, axis=1, keepdims=True)
    log_prob = logits - jnp.log(exp_logits_sum)
    mean_log_prob_pos = jnp.sum(mask * log_prob, axis=1) / jnp.sum(mask, axis=1)
    return jnp.mean(-mean_log_prob_pos)


if __name__ == "__main__":
    # Small deterministic inputs consistent with the module's forward:
    #   q: (B, D) normalized features, labels: (B,), prototypes: (C, D)
    B, D, C = 8, 32, 5
    key = jax.random.PRNGKey(0)
    kq, kl, kp = jax.random.split(key, 3)

    q = jax.random.normal(kq, (B, D), dtype=jnp.float32)
    q = q / jnp.linalg.norm(q, axis=1, keepdims=True)
    labels = jax.random.randint(kl, (B,), 0, C, dtype=jnp.int32)
    prototypes = jax.random.normal(kp, (C, D), dtype=jnp.float32)
    prototypes = prototypes / jnp.linalg.norm(prototypes, axis=1, keepdims=True)

    ref = _reference_loss(q, labels, prototypes, 0.07, C)

    # Exact path: f32 MXU operands -> tight tolerance against the f32 reference.
    loss_f32 = supcon_p_loss(q, labels, prototypes, temperature=0.07, num_classes=C,
                             matmul_dtype=jnp.float32)
    loss_f32 = jax.block_until_ready(loss_f32)
    np.testing.assert_allclose(np.asarray(loss_f32), np.asarray(ref), rtol=1e-5, atol=2e-5)

    # Fast path: bf16 MXU operands with f32 accumulation -> loose tolerance.
    loss_bf16 = supcon_p_loss(q, labels, prototypes, temperature=0.07, num_classes=C,
                              matmul_dtype=jnp.bfloat16)
    loss_bf16 = jax.block_until_ready(loss_bf16)
    np.testing.assert_allclose(np.asarray(loss_bf16), np.asarray(ref), rtol=5e-2, atol=5e-2)

    print("KERNEL_OK")
</pallas_src>

<mosaic_0001>
module attributes {stable_mosaic.version = 11 : i64} {
  func.func @_supcon_kernel(%arg0: i32, %arg1: i32, %arg2: memref<128x128xf32, #tpu.memory_space<vmem>>, %arg3: memref<128x128xf32, #tpu.memory_space<vmem>>, %arg4: memref<128x1xi32, #tpu.memory_space<vmem>>, %arg5: memref<1x128xi32, #tpu.memory_space<vmem>>, %arg6: memref<1x128xf32, #tpu.memory_space<vmem>>, %arg7: memref<1x128xf32, #tpu.memory_space<vmem>>, %arg8: memref<128x1xf32, #tpu.memory_space<vmem>>, %arg9: memref<128x1xf32, #tpu.memory_space<vmem>>, %arg10: memref<128x1xf32, #tpu.memory_space<vmem>>, %arg11: memref<128x1xf32, #tpu.memory_space<vmem>>, %arg12: memref<128x1xf32, #tpu.memory_space<vmem>>) attributes {dimension_semantics = [#tpu.dimension_semantics<parallel>, #tpu.dimension_semantics<arbitrary>], iteration_bounds = array<i64: 1, 1>, scalar_prefetch = 0 : i64, scratch_operands = 4 : i64, tpu.core_type = #tpu.core_type<tc>, window_params = [{transform_indices = @transform_0, window_bounds = array<i64: 128, 128>}, {transform_indices = @transform_1, window_bounds = array<i64: 128, 128>}, {transform_indices = @transform_2, window_bounds = array<i64: 128, 1>}, {transform_indices = @transform_3, window_bounds = array<i64: 1, 128>}, {transform_indices = @transform_4, window_bounds = array<i64: 1, 128>}, {transform_indices = @transform_5, window_bounds = array<i64: 1, 128>}, {transform_indices = @transform_6, window_bounds = array<i64: 128, 1>}]} {
    %c0_i32 = arith.constant 0 : i32
    %0 = arith.cmpi eq, %arg1, %c0_i32 : i32
    %1 = arith.extui %0 : i1 to i32
    %c0_i32_0 = arith.constant 0 : i32
    %2 = arith.cmpi ne, %1, %c0_i32_0 : i32
    scf.if %2 {
      %cst_35 = arith.constant 0xFF800000 : f32
      %67 = vector.broadcast %cst_35 : f32 to vector<128x1xf32>
      %c0_36 = arith.constant 0 : index
      %c0_37 = arith.constant 0 : index
      %68 = vector.load %arg9[%c0_36, %c0_37] : memref<128x1xf32, #tpu.memory_space<vmem>>, vector<128x1xf32>
      tpu.vector_store %arg9[%c0_36, %c0_37], %67 {strides = array<i32>} : memref<128x1xf32, #tpu.memory_space<vmem>>, vector<128x1xf32>,
      %cst_38 = arith.constant 0.000000e+00 : f32
      %69 = vector.broadcast %cst_38 : f32 to vector<128x1xf32>
      %c0_39 = arith.constant 0 : index
      %c0_40 = arith.constant 0 : index
      %70 = vector.load %arg10[%c0_39, %c0_40] : memref<128x1xf32, #tpu.memory_space<vmem>>, vector<128x1xf32>
      tpu.vector_store %arg10[%c0_39, %c0_40], %69 {strides = array<i32>} : memref<128x1xf32, #tpu.memory_space<vmem>>, vector<128x1xf32>,
      %cst_41 = arith.constant 0.000000e+00 : f32
      %71 = vector.broadcast %cst_41 : f32 to vector<128x1xf32>
      %c0_42 = arith.constant 0 : index
      %c0_43 = arith.constant 0 : index
      %72 = vector.load %arg11[%c0_42, %c0_43] : memref<128x1xf32, #tpu.memory_space<vmem>>, vector<128x1xf32>
      tpu.vector_store %arg11[%c0_42, %c0_43], %71 {strides = array<i32>} : memref<128x1xf32, #tpu.memory_space<vmem>>, vector<128x1xf32>,
      %cst_44 = arith.constant 0.000000e+00 : f32
      %73 = vector.broadcast %cst_44 : f32 to vector<128x1xf32>
      %c0_45 = arith.constant 0 : index
      %c0_46 = arith.constant 0 : index
      %74 = vector.load %arg12[%c0_45, %c0_46] : memref<128x1xf32, #tpu.memory_space<vmem>>, vector<128x1xf32>
      tpu.vector_store %arg12[%c0_45, %c0_46], %73 {strides = array<i32>} : memref<128x1xf32, #tpu.memory_space<vmem>>, vector<128x1xf32>,
    } else {
    }
    %c0 = arith.constant 0 : index
    %c0_1 = arith.constant 0 : index
    %3 = vector.load %arg2[%c0, %c0_1] : memref<128x128xf32, #tpu.memory_space<vmem>>, vector<128x128xf32>
    %c0_2 = arith.constant 0 : index
    %c0_3 = arith.constant 0 : index
    %4 = vector.load %arg3[%c0_2, %c0_3] : memref<128x128xf32, #tpu.memory_space<vmem>>, vector<128x128xf32>
    %cst = arith.constant dense<0.000000e+00> : vector<128x128xf32>
    %5 = tpu.matmul %3, %4, %cst {dimension_numbers = #tpu.dot_dimension_numbers<[1], [1], [0], [0], [0, 0, 1, 0], [], []>} : vector<128x128xf32>, vector<128x128xf32>, vector<128x128xf32> -> vector<128x128xf32>
    %c128_i32 = arith.constant 128 : i32
    %6 = arith.muli %arg0, %c128_i32 : i32
    %7 = tpu.iota {dimensions = array<i32: 0>} : vector<128x128xi32>
    %8 = vector.broadcast %6 : i32 to vector<128x128xi32>
    %9 = arith.addi %8, %7 : vector<128x128xi32>
    %c128_i32_4 = arith.constant 128 : i32
    %10 = arith.muli %arg1, %c128_i32_4 : i32
    %11 = tpu.iota {dimensions = array<i32: 1>} : vector<128x128xi32>
    %12 = vector.broadcast %10 : i32 to vector<128x128xi32>
    %13 = arith.addi %12, %11 : vector<128x128xi32>
    %c0_5 = arith.constant 0 : index
    %c0_6 = arith.constant 0 : index
    %14 = vector.load %arg4[%c0_5, %c0_6] : memref<128x1xi32, #tpu.memory_space<vmem>>, vector<128x1xi32>
    %c0_7 = arith.constant 0 : index
    %c0_8 = arith.constant 0 : index
    %15 = vector.load %arg5[%c0_7, %c0_8] : memref<1x128xi32, #tpu.memory_space<vmem>>, vector<1x128xi32>
    %c0_9 = arith.constant 0 : index
    %c0_10 = arith.constant 0 : index
    %16 = vector.load %arg6[%c0_9, %c0_10] : memref<1x128xf32, #tpu.memory_space<vmem>>, vector<1x128xf32>
    %c0_11 = arith.constant 0 : index
    %c0_12 = arith.constant 0 : index
    %17 = vector.load %arg7[%c0_11, %c0_12] : memref<1x128xf32, #tpu.memory_space<vmem>>, vector<1x128xf32>
    %18 = arith.cmpi ne, %13, %9 : vector<128x128xi32>
    %c13_i32 = arith.constant 13 : i32
    %19 = vector.broadcast %c13_i32 : i32 to vector<128x128xi32>
    %20 = arith.cmpi slt, %13, %19 : vector<128x128xi32>
    %21 = arith.andi %18, %20 : vector<128x128xi1>
    %22 = arith.extui %21 : vector<128x128xi1> to vector<128x128xi32>
    %23 = arith.sitofp %22 : vector<128x128xi32> to vector<128x128xf32>
    %24 = vector.broadcast %14 : vector<128x1xi32> to vector<128x128xi32>
    %25 = vector.broadcast %15 : vector<1x128xi32> to vector<128x128xi32>
    %26 = arith.cmpi eq, %24, %25 : vector<128x128xi32>
    %27 = arith.andi %26, %21 : vector<128x128xi1>
    %28 = arith.extui %27 : vector<128x128xi1> to vector<128x128xi32>
    %29 = arith.sitofp %28 : vector<128x128xi32> to vector<128x128xf32>
    %30 = vector.shape_cast %17 : vector<1x128xf32> to vector<1x128xf32>
    %31 = vector.broadcast %30 : vector<1x128xf32> to vector<128x128xf32>
    %32 = vector.shape_cast %16 : vector<1x128xf32> to vector<1x128xf32>
    %33 = vector.broadcast %32 : vector<1x128xf32> to vector<128x128xf32>
    %34 = arith.select %27, %31, %33 : vector<128x128xi1>, vector<128x128xf32>
    %35 = arith.mulf %34, %23 : vector<128x128xf32>
    %c0_13 = arith.constant 0 : index
    %c0_14 = arith.constant 0 : index
    %36 = vector.load %arg9[%c0_13, %c0_14] : memref<128x1xf32, #tpu.memory_space<vmem>>, vector<128x1xf32>
    %cst_15 = arith.constant dense<0xFF800000> : vector<128xf32>
    %37 = vector.multi_reduction <maximumf>, %5, %cst_15 [1] : vector<128x128xf32> to vector<128xf32>
    %38 = vector.shape_cast %37 : vector<128xf32> to vector<128x1xf32>
    %39 = arith.maximumf %36, %38 : vector<128x1xf32>
    %40 = arith.subf %36, %39 : vector<128x1xf32>
    %41 = math.exp %40 : vector<128x1xf32>
    %42 = vector.broadcast %39 : vector<128x1xf32> to vector<128x128xf32>
    %43 = arith.subf %5, %42 : vector<128x128xf32>
    %44 = math.exp %43 : vector<128x128xf32>
    %c0_16 = arith.constant 0 : index
    %c0_17 = arith.constant 0 : index
    %45 = vector.load %arg10[%c0_16, %c0_17] : memref<128x1xf32, #tpu.memory_space<vmem>>, vector<128x1xf32>
    %46 = arith.mulf %41, %45 : vector<128x1xf32>
    %47 = arith.mulf %35, %44 : vector<128x128xf32>
    %cst_18 = arith.constant dense<0.000000e+00> : vector<128xf32>
    %48 = vector.multi_reduction <add>, %47, %cst_18 [1] : vector<128x128xf32> to vector<128xf32>
    %49 = vector.shape_cast %48 : vector<128xf32> to vector<128x1xf32>
    %50 = arith.addf %46, %49 : vector<128x1xf32>
    %c0_19 = arith.constant 0 : index
    %c0_20 = arith.constant 0 : index
    %51 = vector.load %arg10[%c0_19, %c0_20] : memref<128x1xf32, #tpu.memory_space<vmem>>, vector<128x1xf32>
    tpu.vector_store %arg10[%c0_19, %c0_20], %50 {strides = array<i32>} : memref<128x1xf32, #tpu.memory_space<vmem>>, vector<128x1xf32>,
    %c0_21 = arith.constant 0 : index
    %c0_22 = arith.constant 0 : index
    %52 = vector.load %arg9[%c0_21, %c0_22] : memref<128x1xf32, #tpu.memory_space<vmem>>, vector<128x1xf32>
    tpu.vector_store %arg9[%c0_21, %c0_22], %39 {strides = array<i32>} : memref<128x1xf32, #tpu.memory_space<vmem>>, vector<128x1xf32>,
    %c0_23 = arith.constant 0 : index
    %c0_24 = arith.constant 0 : index
    %53 = vector.load %arg11[%c0_23, %c0_24] : memref<128x1xf32, #tpu.memory_space<vmem>>, vector<128x1xf32>
    %54 = arith.mulf %29, %5 : vector<128x128xf32>
    %cst_25 = arith.constant dense<0.000000e+00> : vector<128xf32>
    %55 = vector.multi_reduction <add>, %54, %cst_25 [1] : vector<128x128xf32> to vector<128xf32>
    %56 = vector.shape_cast %55 : vector<128xf32> to vector<128x1xf32>
    %57 = arith.addf %53, %56 : vector<128x1xf32>
    %c0_26 = arith.constant 0 : index
    %c0_27 = arith.constant 0 : index
    %58 = vector.load %arg11[%c0_26, %c0_27] : memref<128x1xf32, #tpu.memory_space<vmem>>, vector<128x1xf32>
    tpu.vector_store %arg11[%c0_26, %c0_27], %57 {strides = array<i32>} : memref<128x1xf32, #tpu.memory_space<vmem>>, vector<128x1xf32>,
    %c0_28 = arith.constant 0 : index
    %c0_29 = arith.constant 0 : index
    %59 = vector.load %arg12[%c0_28, %c0_29] : memref<128x1xf32, #tpu.memory_space<vmem>>, vector<128x1xf32>
    %cst_30 = arith.constant dense<0.000000e+00> : vector<128xf32>
    %60 = vector.multi_reduction <add>, %29, %cst_30 [1] : vector<128x128xf32> to vector<128xf32>
    %61 = vector.shape_cast %60 : vector<128xf32> to vector<128x1xf32>
    %62 = arith.addf %59, %61 : vector<128x1xf32>
    %c0_31 = arith.constant 0 : index
    %c0_32 = arith.constant 0 : index
    %63 = vector.load %arg12[%c0_31, %c0_32] : memref<128x1xf32, #tpu.memory_space<vmem>>, vector<128x1xf32>
    tpu.vector_store %arg12[%c0_31, %c0_32], %62 {strides = array<i32>} : memref<128x1xf32, #tpu.memory_space<vmem>>, vector<128x1xf32>,
    %c0_i32_33 = arith.constant 0 : i32
    %64 = arith.cmpi eq, %arg1, %c0_i32_33 : i32
    %65 = arith.extui %64 : i1 to i32
    %c0_i32_34 = arith.constant 0 : i32
    %66 = arith.cmpi ne, %65, %c0_i32_34 : i32
    scf.if %66 {
      %c0_35 = arith.constant 0 : index
      %c0_36 = arith.constant 0 : index
      %67 = vector.load %arg12[%c0_35, %c0_36] : memref<128x1xf32, #tpu.memory_space<vmem>>, vector<128x1xf32>
      %cst_37 = arith.constant 1.000000e+00 : f32
      %68 = vector.broadcast %cst_37 : f32 to vector<128x1xf32>
      %69 = arith.maximumf %67, %68 : vector<128x1xf32>
      %c0_38 = arith.constant 0 : index
      %c0_39 = arith.constant 0 : index
      %70 = vector.load %arg11[%c0_38, %c0_39] : memref<128x1xf32, #tpu.memory_space<vmem>>, vector<128x1xf32>
      %71 = arith.divf %70, %69 : vector<128x1xf32>
      %c0_40 = arith.constant 0 : index
      %c0_41 = arith.constant 0 : index
      %72 = vector.load %arg9[%c0_40, %c0_41] : memref<128x1xf32, #tpu.memory_space<vmem>>, vector<128x1xf32>
      %73 = arith.subf %71, %72 : vector<128x1xf32>
      %c0_42 = arith.constant 0 : index
      %c0_43 = arith.constant 0 : index
      %74 = vector.load %arg10[%c0_42, %c0_43] : memref<128x1xf32, #tpu.memory_space<vmem>>, vector<128x1xf32>
      %75 = math.log %74 : vector<128x1xf32>
      %76 = arith.subf %73, %75 : vector<128x1xf32>
      %cst_44 = arith.constant 0.000000e+00 : f32
      %77 = vector.broadcast %cst_44 : f32 to vector<128x1xf32>
      %78 = arith.subf %77, %76 : vector<128x1xf32>
      %c0_45 = arith.constant 0 : index
      %c0_46 = arith.constant 0 : index
      %79 = vector.load %arg8[%c0_45, %c0_46] : memref<128x1xf32, #tpu.memory_space<vmem>>, vector<128x1xf32>
      tpu.vector_store %arg8[%c0_45, %c0_46], %78 {strides = array<i32>} : memref<128x1xf32, #tpu.memory_space<vmem>>, vector<128x1xf32>,
    } else {
    }
    return
  }
  func.func @transform_0(%arg0: i32, %arg1: i32) -> (i32, i32) {
    %c0_i32 = arith.constant 0 : i32
    %c0_i32_0 = arith.constant 0 : i32
    return %arg0, %c0_i32 : i32, i32
  }
  func.func @transform_1(%arg0: i32, %arg1: i32) -> (i32, i32) {
    %c0_i32 = arith.constant 0 : i32
    %c0_i32_0 = arith.constant 0 : i32
    return %arg1, %c0_i32 : i32, i32
  }
  func.func @transform_2(%arg0: i32, %arg1: i32) -> (i32, i32) {
    %c0_i32 = arith.constant 0 : i32
    %c0_i32_0 = arith.constant 0 : i32
    return %arg0, %c0_i32 : i32, i32
  }
  func.func @transform_3(%arg0: i32, %arg1: i32) -> (i32, i32) {
    %c0_i32 = arith.constant 0 : i32
    %c0_i32_0 = arith.constant 0 : i32
    return %c0_i32, %arg1 : i32, i32
  }
  func.func @transform_4(%arg0: i32, %arg1: i32) -> (i32, i32) {
    %c0_i32 = arith.constant 0 : i32
    %c0_i32_0 = arith.constant 0 : i32
    return %c0_i32, %arg1 : i32, i32
  }
  func.func @transform_5(%arg0: i32, %arg1: i32) -> (i32, i32) {
    %c0_i32 = arith.constant 0 : i32
    %c0_i32_0 = arith.constant 0 : i32
    return %c0_i32, %arg1 : i32, i32
  }
  func.func @transform_6(%arg0: i32, %arg1: i32) -> (i32, i32) {
    %c0_i32 = arith.constant 0 : i32
    %c0_i32_0 = arith.constant 0 : i32
    return %arg0, %c0_i32 : i32, i32
  }
}

</mosaic_0001>

<llo_original>
// kernel: tpu_custom_call.1
$region0: #{tpu_custom_call.1}
  #allocation0 [shape = 'u32[]', space=smem, size = 0x4, offset = 0x4, fixed_abs, tag = 'smem constant byte address 0x4 - core index']
  #allocation1 [shape = 'u32[144,128]{1,0:T(1,128)}', space=vmem, size = 0x12000, scoped, tag = 'internal scratch']
  #allocation2 [shape = 'f32[128,1]{1,0:T(8,128)}', space=vmem, size = 0x10000, scoped, tag = 'scratch operand']
  #allocation3 [shape = 'f32[128,1]{1,0:T(8,128)}', space=vmem, size = 0x10000, scoped, tag = 'scratch operand']
  #allocation4 [shape = 'f32[128,1]{1,0:T(8,128)}', space=vmem, size = 0x10000, scoped, tag = 'scratch operand']
  #allocation5 [shape = 'f32[128,1]{1,0:T(8,128)}', space=vmem, size = 0x10000, scoped, tag = 'scratch operand']
  %s0 = inlined_call_operand.vmem [shape: f32[128,128], index: 0, kind: input, shape index: {}]
  %s1 = inlined_call_operand.hbm [shape: f32[128,128], index: 1, kind: input, shape index: {}]
  %s2 = inlined_call_operand.vmem [shape: s32[128,1], index: 2, kind: input, shape index: {}]
  %s3 = inlined_call_operand.vmem [shape: s32[1,128], index: 3, kind: input, shape index: {}]
  %s4 = inlined_call_operand.vmem [shape: f32[1,128], index: 4, kind: input, shape index: {}]
  %s5 = inlined_call_operand.vmem [shape: f32[1,128], index: 5, kind: input, shape index: {}]
  %s6 = inlined_call_operand.vmem [shape: f32[128,1], index: 6, kind: output, shape index: {}]
  %s7 = sld [smem:[#allocation0]]
  $region46: #{tpu_custom_call.1} parent=0
    _
  %s9 = ssub.s32 1, %s7
  %s10 = scalar_select 0, %s9, %s7
  $region1: #{tpu_custom_call.1} parent=0
    #allocation6 [shape = 'u8[65536]{0}', space=vmem, size = 0x10000, scoped, tag = 'input window, operand 1, single buffered']
    #allocation7 [shape = 's32[1]{0}', space=sflag, size = 0x4, scoped, tag = 'scoped memory for tpu_custom_call.1']
    %11 = vsyncpa [#allocation7], 0
    // Predicated region
    $region2: #{tpu_custom_call.1} parent=1 // pred_check
      _
    $region3: #{tpu_custom_call.1} parent=1 // pred_check_branch
      %13 = sbr.rel (0) target = $region5
    $region4: #{tpu_custom_call.1} parent=1 // pred_region
      _
    $region5: #{tpu_custom_call.1} parent=1 // pred_fallthru
      _
    // Predicated region
    $region6: #{tpu_custom_call.1} parent=1 // pred_check
      _
    $region7: #{tpu_custom_call.1} parent=1 // pred_check_branch
      %15 = sbr.rel (0) target = $region9
    $region8: #{tpu_custom_call.1} parent=1 // pred_region
      %s17 = ssub.s32 2048, 2048
      %18 = vsyncadd [#allocation7], %s17
      %s19 = sshll.u32 [#allocation6], 4
      %s20 = int_to_ptr.vmem [resolvable:$true] %s19
      %25 = dma.hbm_to_vmem [thread:$0]  %s1, 2048, %s20, [#allocation7], 128, 128, 8
    $region9: #{tpu_custom_call.1} parent=1 // pred_fallthru
      _
    // Predicated region
    $region10: #{tpu_custom_call.1} parent=1 // pred_check
      _
    $region11: #{tpu_custom_call.1} parent=1 // pred_check_branch
      %27 = sbr.rel (0) target = $region13
    $region12: #{tpu_custom_call.1} parent=1 // pred_region
      _
    $region13: #{tpu_custom_call.1} parent=1 // pred_fallthru
      _
    // Predicated region
    $region14: #{tpu_custom_call.1} parent=1 // pred_check
      _
    $region15: #{tpu_custom_call.1} parent=1 // pred_check_branch
      %29 = sbr.rel (0) target = $region17
    $region16: #{tpu_custom_call.1} parent=1 // pred_region
      _
    $region17: #{tpu_custom_call.1} parent=1 // pred_fallthru
      _
    // Predicated region
    $region18: #{tpu_custom_call.1} parent=1 // pred_check
      _
    $region19: #{tpu_custom_call.1} parent=1 // pred_check_branch
      %31 = sbr.rel (0) target = $region21
    $region20: #{tpu_custom_call.1} parent=1 // pred_region
      _
    $region21: #{tpu_custom_call.1} parent=1 // pred_fallthru
      _
    // Predicated region
    $region22: #{tpu_custom_call.1} parent=1 // pred_check
      _
    $region23: #{tpu_custom_call.1} parent=1 // pred_check_branch
      %33 = sbr.rel (0) target = $region25
    $region24: #{tpu_custom_call.1} parent=1 // pred_region
      _
    $region25: #{tpu_custom_call.1} parent=1 // pred_fallthru
      _
    // Predicated region
    $region26: #{tpu_custom_call.1} parent=1 // pred_check
      _
    $region27: #{tpu_custom_call.1} parent=1 // pred_check_branch
      %35 = sbr.rel (0) target = $region29
    $region28: #{tpu_custom_call.1} parent=1 // pred_region
      %36 = dma.done [#allocation7], 2048
    $region29: #{tpu_custom_call.1} parent=1 // pred_fallthru
      _
    %p37 = scmp.eq.s32.totalorder 0, 0
    // Predicated region
    $region30: #{tpu_custom_call.1} parent=1 // pred_check
      %p38 = pneg %p37
    $region31: #{tpu_custom_call.1} parent=1 // pred_check_branch
      %40 = sbr.rel (%p38) target = $region33
    $region32: #{tpu_custom_call.1} parent=1 // pred_region
      %vm41 = vcmask 7168
      %42 = vst.msk [vmem:[#allocation2] sm:$0xff] %vm41, -inf
      %43 = vst.msk [vmem:[#allocation2 + $0x8] sm:$0xff] %vm41, -inf
      %44 = vst.msk [vmem:[#allocation2 + $0x10] sm:$0xff] %vm41, -inf
      %45 = vst.msk [vmem:[#allocation2 + $0x18] sm:$0xff] %vm41, -inf
      %46 = vst.msk [vmem:[#allocation2 + $0x20] sm:$0xff] %vm41, -inf
      %47 = vst.msk [vmem:[#allocation2 + $0x28] sm:$0xff] %vm41, -inf
      %48 = vst.msk [vmem:[#allocation2 + $0x30] sm:$0xff] %vm41, -inf
      %49 = vst.msk [vmem:[#allocation2 + $0x38] sm:$0xff] %vm41, -inf
      %50 = vst.msk [vmem:[#allocation2 + $0x40] sm:$0xff] %vm41, -inf
      %51 = vst.msk [vmem:[#allocation2 + $0x48] sm:$0xff] %vm41, -inf
      %52 = vst.msk [vmem:[#allocation2 + $0x50] sm:$0xff] %vm41, -inf
      %53 = vst.msk [vmem:[#allocation2 + $0x58] sm:$0xff] %vm41, -inf
      %54 = vst.msk [vmem:[#allocation2 + $0x60] sm:$0xff] %vm41, -inf
      %55 = vst.msk [vmem:[#allocation2 + $0x68] sm:$0xff] %vm41, -inf
      %56 = vst.msk [vmem:[#allocation2 + $0x70] sm:$0xff] %vm41, -inf
      %57 = vst.msk [vmem:[#allocation2 + $0x78] sm:$0xff] %vm41, -inf
      %58 = vst.msk [vmem:[#allocation3] sm:$0xff] %vm41, 0.0
      %59 = vst.msk [vmem:[#allocation3 + $0x8] sm:$0xff] %vm41, 0.0
      %60 = vst.msk [vmem:[#allocation3 + $0x10] sm:$0xff] %vm41, 0.0
      %61 = vst.msk [vmem:[#allocation3 + $0x18] sm:$0xff] %vm41, 0.0
      %62 = vst.msk [vmem:[#allocation3 + $0x20] sm:$0xff] %vm41, 0.0
      %63 = vst.msk [vmem:[#allocation3 + $0x28] sm:$0xff] %vm41, 0.0
      %64 = vst.msk [vmem:[#allocation3 + $0x30] sm:$0xff] %vm41, 0.0
      %65 = vst.msk [vmem:[#allocation3 + $0x38] sm:$0xff] %vm41, 0.0
      %66 = vst.msk [vmem:[#allocation3 + $0x40] sm:$0xff] %vm41, 0.0
      %67 = vst.msk [vmem:[#allocation3 + $0x48] sm:$0xff] %vm41, 0.0
      %68 = vst.msk [vmem:[#allocation3 + $0x50] sm:$0xff] %vm41, 0.0
      %69 = vst.msk [vmem:[#allocation3 + $0x58] sm:$0xff] %vm41, 0.0
      %70 = vst.msk [vmem:[#allocation3 + $0x60] sm:$0xff] %vm41, 0.0
      %71 = vst.msk [vmem:[#allocation3 + $0x68] sm:$0xff] %vm41, 0.0
      %72 = vst.msk [vmem:[#allocation3 + $0x70] sm:$0xff] %vm41, 0.0
      %73 = vst.msk [vmem:[#allocation3 + $0x78] sm:$0xff] %vm41, 0.0
      %74 = vst.msk [vmem:[#allocation4] sm:$0xff] %vm41, 0.0
      %75 = vst.msk [vmem:[#allocation4 + $0x8] sm:$0xff] %vm41, 0.0
      %76 = vst.msk [vmem:[#allocation4 + $0x10] sm:$0xff] %vm41, 0.0
      %77 = vst.msk [vmem:[#allocation4 + $0x18] sm:$0xff] %vm41, 0.0
      %78 = vst.msk [vmem:[#allocation4 + $0x20] sm:$0xff] %vm41, 0.0
      %79 = vst.msk [vmem:[#allocation4 + $0x28] sm:$0xff] %vm41, 0.0
      %80 = vst.msk [vmem:[#allocation4 + $0x30] sm:$0xff] %vm41, 0.0
      %81 = vst.msk [vmem:[#allocation4 + $0x38] sm:$0xff] %vm41, 0.0
      %82 = vst.msk [vmem:[#allocation4 + $0x40] sm:$0xff] %vm41, 0.0
      %83 = vst.msk [vmem:[#allocation4 + $0x48] sm:$0xff] %vm41, 0.0
      %84 = vst.msk [vmem:[#allocation4 + $0x50] sm:$0xff] %vm41, 0.0
      %85 = vst.msk [vmem:[#allocation4 + $0x58] sm:$0xff] %vm41, 0.0
      %86 = vst.msk [vmem:[#allocation4 + $0x60] sm:$0xff] %vm41, 0.0
      %87 = vst.msk [vmem:[#allocation4 + $0x68] sm:$0xff] %vm41, 0.0
      %88 = vst.msk [vmem:[#allocation4 + $0x70] sm:$0xff] %vm41, 0.0
      %89 = vst.msk [vmem:[#allocation4 + $0x78] sm:$0xff] %vm41, 0.0
      %90 = vst.msk [vmem:[#allocation5] sm:$0xff] %vm41, 0.0
      %91 = vst.msk [vmem:[#allocation5 + $0x8] sm:$0xff] %vm41, 0.0
      %92 = vst.msk [vmem:[#allocation5 + $0x10] sm:$0xff] %vm41, 0.0
      %93 = vst.msk [vmem:[#allocation5 + $0x18] sm:$0xff] %vm41, 0.0
      %94 = vst.msk [vmem:[#allocation5 + $0x20] sm:$0xff] %vm41, 0.0
      %95 = vst.msk [vmem:[#allocation5 + $0x28] sm:$0xff] %vm41, 0.0
      %96 = vst.msk [vmem:[#allocation5 + $0x30] sm:$0xff] %vm41, 0.0
      %97 = vst.msk [vmem:[#allocation5 + $0x38] sm:$0xff] %vm41, 0.0
      %98 = vst.msk [vmem:[#allocation5 + $0x40] sm:$0xff] %vm41, 0.0
      %99 = vst.msk [vmem:[#allocation5 + $0x48] sm:$0xff] %vm41, 0.0
      %100 = vst.msk [vmem:[#allocation5 + $0x50] sm:$0xff] %vm41, 0.0
      %101 = vst.msk [vmem:[#allocation5 + $0x58] sm:$0xff] %vm41, 0.0
      %102 = vst.msk [vmem:[#allocation5 + $0x60] sm:$0xff] %vm41, 0.0
      %103 = vst.msk [vmem:[#allocation5 + $0x68] sm:$0xff] %vm41, 0.0
      %104 = vst.msk [vmem:[#allocation5 + $0x70] sm:$0xff] %vm41, 0.0
      %105 = vst.msk [vmem:[#allocation5 + $0x78] sm:$0xff] %vm41, 0.0
    $region33: #{tpu_custom_call.1} parent=1 // pred_fallthru
      _
    %v106 = vld [vmem:[%s0] sm:$0xff]
    %v107 = vld [vmem:[%s0 + $0x8] sm:$0xff]
    %v108 = vld [vmem:[%s0 + $0x10] sm:$0xff]
    %v109 = vld [vmem:[%s0 + $0x18] sm:$0xff]
    %v110 = vld [vmem:[%s0 + $0x20] sm:$0xff]
    %v111 = vld [vmem:[%s0 + $0x28] sm:$0xff]
    %v112 = vld [vmem:[%s0 + $0x30] sm:$0xff]
    %v113 = vld [vmem:[%s0 + $0x38] sm:$0xff]
    %v114 = vld [vmem:[%s0 + $0x40] sm:$0xff]
    %v115 = vld [vmem:[%s0 + $0x48] sm:$0xff]
    %v116 = vld [vmem:[%s0 + $0x50] sm:$0xff]
    %v117 = vld [vmem:[%s0 + $0x58] sm:$0xff]
    %v118 = vld [vmem:[%s0 + $0x60] sm:$0xff]
    %v119 = vld [vmem:[%s0 + $0x68] sm:$0xff]
    %v120 = vld [vmem:[%s0 + $0x70] sm:$0xff]
    %v121 = vld [vmem:[%s0 + $0x78] sm:$0xff]
    %v122 = vld [vmem:[#allocation6] sm:$0xff]
    %v123 = vld [vmem:[#allocation6 + $0x8] sm:$0xff]
    %v124 = vld [vmem:[#allocation6 + $0x10] sm:$0xff]
    %v125 = vld [vmem:[#allocation6 + $0x18] sm:$0xff]
    %v126 = vld [vmem:[#allocation6 + $0x20] sm:$0xff]
    %v127 = vld [vmem:[#allocation6 + $0x28] sm:$0xff]
    %v128 = vld [vmem:[#allocation6 + $0x30] sm:$0xff]
    %v129 = vld [vmem:[#allocation6 + $0x38] sm:$0xff]
    %v130 = vld [vmem:[#allocation6 + $0x40] sm:$0xff]
    %v131 = vld [vmem:[#allocation6 + $0x48] sm:$0xff]
    %v132 = vld [vmem:[#allocation6 + $0x50] sm:$0xff]
    %v133 = vld [vmem:[#allocation6 + $0x58] sm:$0xff]
    %v134 = vld [vmem:[#allocation6 + $0x60] sm:$0xff]
    %v135 = vld [vmem:[#allocation6 + $0x68] sm:$0xff]
    %v136 = vld [vmem:[#allocation6 + $0x70] sm:$0xff]
    %v137 = vld [vmem:[#allocation6 + $0x78] sm:$0xff]
    %138 = vmatprep.subr.mxu0 0.0
    %139 = vmatpush1.xpose.msra.mxu0 %v137
    %140 = vmatprep.subr.mxu0 0.0
    %141 = vmatpush1.xpose.msra.mxu0 %v136
    %142 = vmatprep.subr.mxu0 0.0
    %143 = vmatpush1.xpose.msra.mxu0 %v135
    %144 = vmatprep.subr.mxu0 0.0
    %145 = vmatpush1.xpose.msra.mxu0 %v134
    %146 = vmatprep.subr.mxu0 0.0
    %147 = vmatpush1.xpose.msra.mxu0 %v133
    %148 = vmatprep.subr.mxu0 0.0
    %149 = vmatpush1.xpose.msra.mxu0 %v132
    %150 = vmatprep.subr.mxu0 0.0
    %151 = vmatpush1.xpose.msra.mxu0 %v131
    %152 = vmatprep.subr.mxu0 0.0
    %153 = vmatpush1.xpose.msra.mxu0 %v130
    %154 = vmatprep.subr.mxu0 0.0
    %155 = vmatpush1.xpose.msra.mxu0 %v129
    %156 = vmatprep.subr.mxu0 0.0
    %157 = vmatpush1.xpose.msra.mxu0 %v128
    %158 = vmatprep.subr.mxu0 0.0
    %159 = vmatpush1.xpose.msra.mxu0 %v127
    %160 = vmatprep.subr.mxu0 0.0
    %161 = vmatpush1.xpose.msra.mxu0 %v126
    %162 = vmatprep.subr.mxu0 0.0
    %163 = vmatpush1.xpose.msra.mxu0 %v125
    %164 = vmatprep.subr.mxu0 0.0
    %165 = vmatpush1.xpose.msra.mxu0 %v124
    %166 = vmatprep.subr.mxu0 0.0
    %167 = vmatpush1.xpose.msra.mxu0 %v123
    %168 = vmatprep.subr.mxu0 0.0
    %169 = vmatpush1.xpose.msra.mxu0 %v122
    %170 = vmatprep.subr.mxu0 0.0
    %171 = vmatpush2.xpose.msra.mxu0 0.0
    %172 = vmatprep.subr.mxu0 0.0
    %173 = vmatpush2.xpose.msra.mxu0 0.0
    %174 = vmatprep.subr.mxu0 0.0
    %175 = vmatpush2.xpose.msra.mxu0 0.0
    %176 = vmatprep.subr.mxu0 0.0
    %177 = vmatpush2.xpose.msra.mxu0 0.0
    %178 = vmatprep.subr.mxu0 0.0
    %179 = vmatpush2.xpose.msra.mxu0 0.0
    %180 = vmatprep.subr.mxu0 0.0
    %181 = vmatpush2.xpose.msra.mxu0 0.0
    %182 = vmatprep.subr.mxu0 0.0
    %183 = vmatpush2.xpose.msra.mxu0 0.0
    %184 = vmatprep.subr.mxu0 0.0
    %185 = vmatpush2.xpose.msra.mxu0 0.0
    %186 = vmatprep.subr.mxu0 0.0
    %187 = vmatpush2.xpose.msra.mxu0 0.0
    %188 = vmatprep.subr.mxu0 0.0
    %189 = vmatpush2.xpose.msra.mxu0 0.0
    %190 = vmatprep.subr.mxu0 0.0
    %191 = vmatpush2.xpose.msra.mxu0 0.0
    %192 = vmatprep.subr.mxu0 0.0
    %193 = vmatpush2.xpose.msra.mxu0 0.0
    %194 = vmatprep.subr.mxu0 0.0
    %195 = vmatpush2.xpose.msra.mxu0 0.0
    %196 = vmatprep.subr.mxu0 0.0
    %197 = vmatpush2.xpose.msra.mxu0 0.0
    %198 = vmatprep.subr.mxu0 0.0
    %199 = vmatpush2.xpose.msra.mxu0 0.0
    %200 = vmatprep.subr.mxu0 0.0
    %201 = vmatpush2.xpose.msra.mxu0 0.0
    %202 = vmatprep.mubr.f32.mxu0 0.0
    %203 = vmatmul.mubr.f32.gmra.mxu0 %v106
    %v204 = vpop.f32.mrf.mxu0
    %v205 = vadd.f32 0.0, %v204
    %v206 = vpop.f32.mrf.mxu0
    %207 = vmatprep.mubr.f32.mxu0 0.0
    %208 = vmatmul.mubr.f32.gmra.mxu0 %v107
    %v209 = vpop.f32.mrf.mxu0
    %v210 = vadd.f32 0.0, %v209
    %v211 = vpop.f32.mrf.mxu0
    %212 = vmatprep.mubr.f32.mxu0 0.0
    %213 = vmatmul.mubr.f32.gmra.mxu0 %v108
    %v214 = vpop.f32.mrf.mxu0
    %v215 = vadd.f32 0.0, %v214
    %v216 = vpop.f32.mrf.mxu0
    %217 = vmatprep.mubr.f32.mxu0 0.0
    %218 = vmatmul.mubr.f32.gmra.mxu0 %v109
    %v219 = vpop.f32.mrf.mxu0
    %v220 = vadd.f32 0.0, %v219
    %v221 = vpop.f32.mrf.mxu0
    %222 = vmatprep.mubr.f32.mxu0 0.0
    %223 = vmatmul.mubr.f32.gmra.mxu0 %v110
    %v224 = vpop.f32.mrf.mxu0
    %v225 = vadd.f32 0.0, %v224
    %v226 = vpop.f32.mrf.mxu0
    %227 = vmatprep.mubr.f32.mxu0 0.0
    %228 = vmatmul.mubr.f32.gmra.mxu0 %v111
    %v229 = vpop.f32.mrf.mxu0
    %v230 = vadd.f32 0.0, %v229
    %v231 = vpop.f32.mrf.mxu0
    %232 = vmatprep.mubr.f32.mxu0 0.0
    %233 = vmatmul.mubr.f32.gmra.mxu0 %v112
    %v234 = vpop.f32.mrf.mxu0
    %v235 = vadd.f32 0.0, %v234
    %v236 = vpop.f32.mrf.mxu0
    %237 = vmatprep.mubr.f32.mxu0 0.0
    %238 = vmatmul.mubr.f32.gmra.mxu0 %v113
    %v239 = vpop.f32.mrf.mxu0
    %v240 = vadd.f32 0.0, %v239
    %v241 = vpop.f32.mrf.mxu0
    %242 = vmatprep.mubr.f32.mxu0 0.0
    %243 = vmatmul.mubr.f32.gmra.mxu0 %v114
    %v244 = vpop.f32.mrf.mxu0
    %v245 = vadd.f32 0.0, %v244
    %v246 = vpop.f32.mrf.mxu0
    %247 = vmatprep.mubr.f32.mxu0 0.0
    %248 = vmatmul.mubr.f32.gmra.mxu0 %v115
    %v249 = vpop.f32.mrf.mxu0
    %v250 = vadd.f32 0.0, %v249
    %v251 = vpop.f32.mrf.mxu0
    %252 = vmatprep.mubr.f32.mxu0 0.0
    %253 = vmatmul.mubr.f32.gmra.mxu0 %v116
    %v254 = vpop.f32.mrf.mxu0
    %v255 = vadd.f32 0.0, %v254
    %v256 = vpop.f32.mrf.mxu0
    %257 = vmatprep.mubr.f32.mxu0 0.0
    %258 = vmatmul.mubr.f32.gmra.mxu0 %v117
    %v259 = vpop.f32.mrf.mxu0
    %v260 = vadd.f32 0.0, %v259
    %v261 = vpop.f32.mrf.mxu0
    %262 = vmatprep.mubr.f32.mxu0 0.0
    %263 = vmatmul.mubr.f32.gmra.mxu0 %v118
    %v264 = vpop.f32.mrf.mxu0
    %v265 = vadd.f32 0.0, %v264
    %v266 = vpop.f32.mrf.mxu0
    %267 = vmatprep.mubr.f32.mxu0 0.0
    %268 = vmatmul.mubr.f32.gmra.mxu0 %v119
    %v269 = vpop.f32.mrf.mxu0
    %v270 = vadd.f32 0.0, %v269
    %v271 = vpop.f32.mrf.mxu0
    %272 = vmatprep.mubr.f32.mxu0 0.0
    %273 = vmatmul.mubr.f32.gmra.mxu0 %v120
    %v274 = vpop.f32.mrf.mxu0
    %v275 = vadd.f32 0.0, %v274
    %v276 = vpop.f32.mrf.mxu0
    %277 = vmatprep.mubr.f32.mxu0 0.0
    %278 = vmatmul.mubr.f32.gmra.mxu0 %v121
    %v279 = vpop.f32.mrf.mxu0
    %v280 = vadd.f32 0.0, %v279
    %v281 = vpop.f32.mrf.mxu0
    %282 = vdwg.mxu0
    %s283 = smul.u32 0, 128
    %v284 = vlaneseq
    %v285 = vshrl.u32 %v284, 7
    %v286 = vadd.s32 %v285, 8
    %v287 = vadd.s32 %v285, 16
    %v288 = vadd.s32 %v285, 24
    %v289 = vadd.s32 %v285, 32
    %v290 = vadd.s32 %v285, 40
    %v291 = vadd.s32 %v285, 48
    %v292 = vadd.s32 %v285, 56
    %v293 = vadd.s32 %v285, 64
    %v294 = vadd.s32 %v285, 72
    %v295 = vadd.s32 %v285, 80
    %v296 = vadd.s32 %v285, 88
    %v297 = vadd.s32 %v285, 96
    %v298 = vadd.s32 %v285, 104
    %v299 = vadd.s32 %v285, 112
    %v300 = vadd.s32 %v285, 120
    %v301 = vstv %s283
    %v302 = vadd.s32 %v301, %v285
    %v303 = vadd.s32 %v301, %v286
    %v304 = vadd.s32 %v301, %v287
    %v305 = vadd.s32 %v301, %v288
    %v306 = vadd.s32 %v301, %v289
    %v307 = vadd.s32 %v301, %v290
    %v308 = vadd.s32 %v301, %v291
    %v309 = vadd.s32 %v301, %v292
    %v310 = vadd.s32 %v301, %v293
    %v311 = vadd.s32 %v301, %v294
    %v312 = vadd.s32 %v301, %v295
    %v313 = vadd.s32 %v301, %v296
    %v314 = vadd.s32 %v301, %v297
    %v315 = vadd.s32 %v301, %v298
    %v316 = vadd.s32 %v301, %v299
    %v317 = vadd.s32 %v301, %v300
    %s318 = smul.u32 0, 128
    %v319 = vlaneseq
    %v320 = vand.u32 %v319, 127
    %v321 = vstv %s318
    %v322 = vadd.s32 %v321, %v320
    %v323 = vld [vmem:[%s2] sm:$0xff]
    %v324 = vld [vmem:[%s2 + $0x8] sm:$0xff]
    %v325 = vld [vmem:[%s2 + $0x10] sm:$0xff]
    %v326 = vld [vmem:[%s2 + $0x18] sm:$0xff]
    %v327 = vld [vmem:[%s2 + $0x20] sm:$0xff]
    %v328 = vld [vmem:[%s2 + $0x28] sm:$0xff]
    %v329 = vld [vmem:[%s2 + $0x30] sm:$0xff]
    %v330 = vld [vmem:[%s2 + $0x38] sm:$0xff]
    %v331 = vld [vmem:[%s2 + $0x40] sm:$0xff]
    %v332 = vld [vmem:[%s2 + $0x48] sm:$0xff]
    %v333 = vld [vmem:[%s2 + $0x50] sm:$0xff]
    %v334 = vld [vmem:[%s2 + $0x58] sm:$0xff]
    %v335 = vld [vmem:[%s2 + $0x60] sm:$0xff]
    %v336 = vld [vmem:[%s2 + $0x68] sm:$0xff]
    %v337 = vld [vmem:[%s2 + $0x70] sm:$0xff]
    %v338 = vld [vmem:[%s2 + $0x78] sm:$0xff]
    %v339 = vld [vmem:[%s3] sm:$0x1]
    %v340 = vld [vmem:[%s4] sm:$0x1]
    %v341 = vld [vmem:[%s5] sm:$0x1]
    %vm342 = vcmp.ne.s32.totalorder %v322, %v302
    %vm343 = vcmp.ne.s32.totalorder %v322, %v303
    %vm344 = vcmp.ne.s32.totalorder %v322, %v304
    %vm345 = vcmp.ne.s32.totalorder %v322, %v305
    %vm346 = vcmp.ne.s32.totalorder %v322, %v306
    %vm347 = vcmp.ne.s32.totalorder %v322, %v307
    %vm348 = vcmp.ne.s32.totalorder %v322, %v308
    %vm349 = vcmp.ne.s32.totalorder %v322, %v309
    %vm350 = vcmp.ne.s32.totalorder %v322, %v310
    %vm351 = vcmp.ne.s32.totalorder %v322, %v311
    %vm352 = vcmp.ne.s32.totalorder %v322, %v312
    %vm353 = vcmp.ne.s32.totalorder %v322, %v313
    %vm354 = vcmp.ne.s32.totalorder %v322, %v314
    %vm355 = vcmp.ne.s32.totalorder %v322, %v315
    %vm356 = vcmp.ne.s32.totalorder %v322, %v316
    %vm357 = vcmp.ne.s32.totalorder %v322, %v317
    %vm358 = vcmp.lt.s32.totalorder %v322, 13
    %vm359 = vmand %vm342, %vm358
    %vm360 = vmand %vm343, %vm358
    %vm361 = vmand %vm344, %vm358
    %vm362 = vmand %vm345, %vm358
    %vm363 = vmand %vm346, %vm358
    %vm364 = vmand %vm347, %vm358
    %vm365 = vmand %vm348, %vm358
    %vm366 = vmand %vm349, %vm358
    %vm367 = vmand %vm350, %vm358
    %vm368 = vmand %vm351, %vm358
    %vm369 = vmand %vm352, %vm358
    %vm370 = vmand %vm353, %vm358
    %vm371 = vmand %vm354, %vm358
    %vm372 = vmand %vm355, %vm358
    %vm373 = vmand %vm356, %vm358
    %vm374 = vmand %vm357, %vm358
    %v375 = vsel %vm359, 1, 0
    %v376 = vsel %vm360, 1, 0
    %v377 = vsel %vm361, 1, 0
    %v378 = vsel %vm362, 1, 0
    %v379 = vsel %vm363, 1, 0
    %v380 = vsel %vm364, 1, 0
    %v381 = vsel %vm365, 1, 0
    %v382 = vsel %vm366, 1, 0
    %v383 = vsel %vm367, 1, 0
    %v384 = vsel %vm368, 1, 0
    %v385 = vsel %vm369, 1, 0
    %v386 = vsel %vm370, 1, 0
    %v387 = vsel %vm371, 1, 0
    %v388 = vsel %vm372, 1, 0
    %v389 = vsel %vm373, 1, 0
    %v390 = vsel %vm374, 1, 0
    %v391 = vcvt.s32.f32 %v375
    %v392 = vcvt.s32.f32 %v376
    %v393 = vcvt.s32.f32 %v377
    %v394 = vcvt.s32.f32 %v378
    %v395 = vcvt.s32.f32 %v379
    %v396 = vcvt.s32.f32 %v380
    %v397 = vcvt.s32.f32 %v381
    %v398 = vcvt.s32.f32 %v382
    %v399 = vcvt.s32.f32 %v383
    %v400 = vcvt.s32.f32 %v384
    %v401 = vcvt.s32.f32 %v385
    %v402 = vcvt.s32.f32 %v386
    %v403 = vcvt.s32.f32 %v387
    %v404 = vcvt.s32.f32 %v388
    %v405 = vcvt.s32.f32 %v389
    %v406 = vcvt.s32.f32 %v390
    %407 = vset.pattern.permute.xlu0 0
    %408 = vperm.xlu0 %407, %v323
    %v409 = vpop.permute.xlu0 %408
    %410 = vset.pattern.permute.xlu0 0
    %411 = vperm.xlu0 %410, %v324
    %v412 = vpop.permute.xlu0 %411
    %413 = vset.pattern.permute.xlu0 0
    %414 = vperm.xlu0 %413, %v325
    %v415 = vpop.permute.xlu0 %414
    %416 = vset.pattern.permute.xlu0 0
    %417 = vperm.xlu0 %416, %v326
    %v418 = vpop.permute.xlu0 %417
    %419 = vset.pattern.permute.xlu0 0
    %420 = vperm.xlu0 %419, %v327
    %v421 = vpop.permute.xlu0 %420
    %422 = vset.pattern.permute.xlu0 0
    %423 = vperm.xlu0 %422, %v328
    %v424 = vpop.permute.xlu0 %423
    %425 = vset.pattern.permute.xlu0 0
    %426 = vperm.xlu0 %425, %v329
    %v427 = vpop.permute.xlu0 %426
    %428 = vset.pattern.permute.xlu0 0
    %429 = vperm.xlu0 %428, %v330
    %v430 = vpop.permute.xlu0 %429
    %431 = vset.pattern.permute.xlu0 0
    %432 = vperm.xlu0 %431, %v331
    %v433 = vpop.permute.xlu0 %432
    %434 = vset.pattern.permute.xlu0 0
    %435 = vperm.xlu0 %434, %v332
    %v436 = vpop.permute.xlu0 %435
    %437 = vset.pattern.permute.xlu0 0
    %438 = vperm.xlu0 %437, %v333
    %v439 = vpop.permute.xlu0 %438
    %440 = vset.pattern.permute.xlu0 0
    %441 = vperm.xlu0 %440, %v334
    %v442 = vpop.permute.xlu0 %441
    %443 = vset.pattern.permute.xlu0 0
    %444 = vperm.xlu0 %443, %v335
    %v445 = vpop.permute.xlu0 %444
    %446 = vset.pattern.permute.xlu0 0
    %447 = vperm.xlu0 %446, %v336
    %v448 = vpop.permute.xlu0 %447
    %449 = vset.pattern.permute.xlu0 0
    %450 = vperm.xlu0 %449, %v337
    %v451 = vpop.permute.xlu0 %450
    %452 = vset.pattern.permute.xlu0 0
    %453 = vperm.xlu0 %452, %v338
    %v454 = vpop.permute.xlu0 %453
    %v455 = vlaneseq
    %v456 = vshrl.u32 %v455, 7
    %v457 = vsub.s32 0, %v456
    %v458 = vrot.slane %v339, %v457
    %vm459 = vcmp.eq.s32.totalorder %v409, %v458
    %vm460 = vcmp.eq.s32.totalorder %v412, %v458
    %vm461 = vcmp.eq.s32.totalorder %v415, %v458
    %vm462 = vcmp.eq.s32.totalorder %v418, %v458
    %vm463 = vcmp.eq.s32.totalorder %v421, %v458
    %vm464 = vcmp.eq.s32.totalorder %v424, %v458
    %vm465 = vcmp.eq.s32.totalorder %v427, %v458
    %vm466 = vcmp.eq.s32.totalorder %v430, %v458
    %vm467 = vcmp.eq.s32.totalorder %v433, %v458
    %vm468 = vcmp.eq.s32.totalorder %v436, %v458
    %vm469 = vcmp.eq.s32.totalorder %v439, %v458
    %vm470 = vcmp.eq.s32.totalorder %v442, %v458
    %vm471 = vcmp.eq.s32.totalorder %v445, %v458
    %vm472 = vcmp.eq.s32.totalorder %v448, %v458
    %vm473 = vcmp.eq.s32.totalorder %v451, %v458
    %vm474 = vcmp.eq.s32.totalorder %v454, %v458
    %vm475 = vmand %vm459, %vm359
    %vm476 = vmand %vm460, %vm360
    %vm477 = vmand %vm461, %vm361
    %vm478 = vmand %vm462, %vm362
    %vm479 = vmand %vm463, %vm363
    %vm480 = vmand %vm464, %vm364
    %vm481 = vmand %vm465, %vm365
    %vm482 = vmand %vm466, %vm366
    %vm483 = vmand %vm467, %vm367
    %vm484 = vmand %vm468, %vm368
    %vm485 = vmand %vm469, %vm369
    %vm486 = vmand %vm470, %vm370
    %vm487 = vmand %vm471, %vm371
    %vm488 = vmand %vm472, %vm372
    %vm489 = vmand %vm473, %vm373
    %vm490 = vmand %vm474, %vm374
    %v491 = vsel %vm475, 1, 0
    %v492 = vsel %vm476, 1, 0
    %v493 = vsel %vm477, 1, 0
    %v494 = vsel %vm478, 1, 0
    %v495 = vsel %vm479, 1, 0
    %v496 = vsel %vm480, 1, 0
    %v497 = vsel %vm481, 1, 0
    %v498 = vsel %vm482, 1, 0
    %v499 = vsel %vm483, 1, 0
    %v500 = vsel %vm484, 1, 0
    %v501 = vsel %vm485, 1, 0
    %v502 = vsel %vm486, 1, 0
    %v503 = vsel %vm487, 1, 0
    %v504 = vsel %vm488, 1, 0
    %v505 = vsel %vm489, 1, 0
    %v506 = vsel %vm490, 1, 0
    %v507 = vcvt.s32.f32 %v491
    %v508 = vcvt.s32.f32 %v492
    %v509 = vcvt.s32.f32 %v493
    %v510 = vcvt.s32.f32 %v494
    %v511 = vcvt.s32.f32 %v495
    %v512 = vcvt.s32.f32 %v496
    %v513 = vcvt.s32.f32 %v497
    %v514 = vcvt.s32.f32 %v498
    %v515 = vcvt.s32.f32 %v499
    %v516 = vcvt.s32.f32 %v500
    %v517 = vcvt.s32.f32 %v501
    %v518 = vcvt.s32.f32 %v502
    %v519 = vcvt.s32.f32 %v503
    %v520 = vcvt.s32.f32 %v504
    %v521 = vcvt.s32.f32 %v505
    %v522 = vcvt.s32.f32 %v506
    %v524 = vlaneseq
    %v525 = vshrl.u32 %v524, 7
    %v526 = vsub.s32 0, %v525
    %v527 = vrot.slane %v341, %v526
    %v530 = vlaneseq
    %v531 = vshrl.u32 %v530, 7
    %v532 = vsub.s32 0, %v531
    %v533 = vrot.slane %v340, %v532
    %v535 = vsel %vm475, %v527, %v533
    %v536 = vsel %vm476, %v527, %v533
    %v537 = vsel %vm477, %v527, %v533
    %v538 = vsel %vm478, %v527, %v533
    %v539 = vsel %vm479, %v527, %v533
    %v540 = vsel %vm480, %v527, %v533
    %v541 = vsel %vm481, %v527, %v533
    %v542 = vsel %vm482, %v527, %v533
    %v543 = vsel %vm483, %v527, %v533
    %v544 = vsel %vm484, %v527, %v533
    %v545 = vsel %vm485, %v527, %v533
    %v546 = vsel %vm486, %v527, %v533
    %v547 = vsel %vm487, %v527, %v533
    %v548 = vsel %vm488, %v527, %v533
    %v549 = vsel %vm489, %v527, %v533
    %v550 = vsel %vm490, %v527, %v533
    %v551 = vmul.f32 %v535, %v391
    %v552 = vmul.f32 %v536, %v392
    %v553 = vmul.f32 %v537, %v393
    %v554 = vmul.f32 %v538, %v394
    %v555 = vmul.f32 %v539, %v395
    %v556 = vmul.f32 %v540, %v396
    %v557 = vmul.f32 %v541, %v397
    %v558 = vmul.f32 %v542, %v398
    %v559 = vmul.f32 %v543, %v399
    %v560 = vmul.f32 %v544, %v400
    %v561 = vmul.f32 %v545, %v401
    %v562 = vmul.f32 %v546, %v402
    %v563 = vmul.f32 %v547, %v403
    %v564 = vmul.f32 %v548, %v404
    %v565 = vmul.f32 %v549, %v405
    %v566 = vmul.f32 %v550, %v406
    %v567 = vld [vmem:[#allocation2] sm:$0xff]
    %v568 = vld [vmem:[#allocation2 + $0x8] sm:$0xff]
    %v569 = vld [vmem:[#allocation2 + $0x10] sm:$0xff]
    %v570 = vld [vmem:[#allocation2 + $0x18] sm:$0xff]
    %v571 = vld [vmem:[#allocation2 + $0x20] sm:$0xff]
    %v572 = vld [vmem:[#allocation2 + $0x28] sm:$0xff]
    %v573 = vld [vmem:[#allocation2 + $0x30] sm:$0xff]
    %v574 = vld [vmem:[#allocation2 + $0x38] sm:$0xff]
    %v575 = vld [vmem:[#allocation2 + $0x40] sm:$0xff]
    %v576 = vld [vmem:[#allocation2 + $0x48] sm:$0xff]
    %v577 = vld [vmem:[#allocation2 + $0x50] sm:$0xff]
    %v578 = vld [vmem:[#allocation2 + $0x58] sm:$0xff]
    %v579 = vld [vmem:[#allocation2 + $0x60] sm:$0xff]
    %v580 = vld [vmem:[#allocation2 + $0x68] sm:$0xff]
    %v581 = vld [vmem:[#allocation2 + $0x70] sm:$0xff]
    %v582 = vld [vmem:[#allocation2 + $0x78] sm:$0xff]
    %583 = vmax.xlane.f32.xlu0 %v205
    %v584 = vpop.xlane.xlu0 %583
    %585 = vmax.xlane.f32.xlu0 %v210
    %v586 = vpop.xlane.xlu0 %585
    %587 = vmax.xlane.f32.xlu0 %v215
    %v588 = vpop.xlane.xlu0 %587
    %589 = vmax.xlane.f32.xlu0 %v220
    %v590 = vpop.xlane.xlu0 %589
    %591 = vmax.xlane.f32.xlu0 %v225
    %v592 = vpop.xlane.xlu0 %591
    %593 = vmax.xlane.f32.xlu0 %v230
    %v594 = vpop.xlane.xlu0 %593
    %595 = vmax.xlane.f32.xlu0 %v235
    %v596 = vpop.xlane.xlu0 %595
    %597 = vmax.xlane.f32.xlu0 %v240
    %v598 = vpop.xlane.xlu0 %597
    %599 = vmax.xlane.f32.xlu0 %v245
    %v600 = vpop.xlane.xlu0 %599
    %601 = vmax.xlane.f32.xlu0 %v250
    %v602 = vpop.xlane.xlu0 %601
    %603 = vmax.xlane.f32.xlu0 %v255
    %v604 = vpop.xlane.xlu0 %603
    %605 = vmax.xlane.f32.xlu0 %v260
    %v606 = vpop.xlane.xlu0 %605
    %607 = vmax.xlane.f32.xlu0 %v265
    %v608 = vpop.xlane.xlu0 %607
    %609 = vmax.xlane.f32.xlu0 %v270
    %v610 = vpop.xlane.xlu0 %609
    %611 = vmax.xlane.f32.xlu0 %v275
    %v612 = vpop.xlane.xlu0 %611
    %613 = vmax.xlane.f32.xlu0 %v280
    %v614 = vpop.xlane.xlu0 %613
    %v615 = vmax.f32 %v567, %v584
    %v616 = vmax.f32 %v568, %v586
    %v617 = vmax.f32 %v569, %v588
    %v618 = vmax.f32 %v570, %v590
    %v619 = vmax.f32 %v571, %v592
    %v620 = vmax.f32 %v572, %v594
    %v621 = vmax.f32 %v573, %v596
    %v622 = vmax.f32 %v574, %v598
    %v623 = vmax.f32 %v575, %v600
    %v624 = vmax.f32 %v576, %v602
    %v625 = vmax.f32 %v577, %v604
    %v626 = vmax.f32 %v578, %v606
    %v627 = vmax.f32 %v579, %v608
    %v628 = vmax.f32 %v580, %v610
    %v629 = vmax.f32 %v581, %v612
    %v630 = vmax.f32 %v582, %v614
    %v631 = vsub.f32 %v567, %v615
    %v632 = vsub.f32 %v568, %v616
    %v633 = vsub.f32 %v569, %v617
    %v634 = vsub.f32 %v570, %v618
    %v635 = vsub.f32 %v571, %v619
    %v636 = vsub.f32 %v572, %v620
    %v637 = vsub.f32 %v573, %v621
    %v638 = vsub.f32 %v574, %v622
    %v639 = vsub.f32 %v575, %v623
    %v640 = vsub.f32 %v576, %v624
    %v641 = vsub.f32 %v577, %v625
    %v642 = vsub.f32 %v578, %v626
    %v643 = vsub.f32 %v579, %v627
    %v644 = vsub.f32 %v580, %v628
    %v645 = vsub.f32 %v581, %v629
    %v646 = vsub.f32 %v582, %v630
    %v647 = vmul.f32 %v631, 1.442695
    %v648 = vpow.pop %v647
    %v649 = vmul.f32 %v632, 1.442695
    %v650 = vpow.pop %v649
    %v651 = vmul.f32 %v633, 1.442695
    %v652 = vpow.pop %v651
    %v653 = vmul.f32 %v634, 1.442695
    %v654 = vpow.pop %v653
    %v655 = vmul.f32 %v635, 1.442695
    %v656 = vpow.pop %v655
    %v657 = vmul.f32 %v636, 1.442695
    %v658 = vpow.pop %v657
    %v659 = vmul.f32 %v637, 1.442695
    %v660 = vpow.pop %v659
    %v661 = vmul.f32 %v638, 1.442695
    %v662 = vpow.pop %v661
    %v663 = vmul.f32 %v639, 1.442695
    %v664 = vpow.pop %v663
    %v665 = vmul.f32 %v640, 1.442695
    %v666 = vpow.pop %v665
    %v667 = vmul.f32 %v641, 1.442695
    %v668 = vpow.pop %v667
    %v669 = vmul.f32 %v642, 1.442695
    %v670 = vpow.pop %v669
    %v671 = vmul.f32 %v643, 1.442695
    %v672 = vpow.pop %v671
    %v673 = vmul.f32 %v644, 1.442695
    %v674 = vpow.pop %v673
    %v675 = vmul.f32 %v645, 1.442695
    %v676 = vpow.pop %v675
    %v677 = vmul.f32 %v646, 1.442695
    %v678 = vpow.pop %v677
    %680 = vset.pattern.permute.xlu0 0
    %681 = vperm.xlu0 %680, %v615
    %v682 = vpop.permute.xlu0 %681
    %685 = vset.pattern.permute.xlu0 0
    %686 = vperm.xlu0 %685, %v616
    %v687 = vpop.permute.xlu0 %686
    %690 = vset.pattern.permute.xlu0 0
    %691 = vperm.xlu0 %690, %v617
    %v692 = vpop.permute.xlu0 %691
    %695 = vset.pattern.permute.xlu0 0
    %696 = vperm.xlu0 %695, %v618
    %v697 = vpop.permute.xlu0 %696
    %700 = vset.pattern.permute.xlu0 0
    %701 = vperm.xlu0 %700, %v619
    %v702 = vpop.permute.xlu0 %701
    %705 = vset.pattern.permute.xlu0 0
    %706 = vperm.xlu0 %705, %v620
    %v707 = vpop.permute.xlu0 %706
    %710 = vset.pattern.permute.xlu0 0
    %711 = vperm.xlu0 %710, %v621
    %v712 = vpop.permute.xlu0 %711
    %715 = vset.pattern.permute.xlu0 0
    %716 = vperm.xlu0 %715, %v622
    %v717 = vpop.permute.xlu0 %716
    %720 = vset.pattern.permute.xlu0 0
    %721 = vperm.xlu0 %720, %v623
    %v722 = vpop.permute.xlu0 %721
    %725 = vset.pattern.permute.xlu0 0
    %726 = vperm.xlu0 %725, %v624
    %v727 = vpop.permute.xlu0 %726
    %730 = vset.pattern.permute.xlu0 0
    %731 = vperm.xlu0 %730, %v625
    %v732 = vpop.permute.xlu0 %731
    %735 = vset.pattern.permute.xlu0 0
    %736 = vperm.xlu0 %735, %v626
    %v737 = vpop.permute.xlu0 %736
    %740 = vset.pattern.permute.xlu0 0
    %741 = vperm.xlu0 %740, %v627
    %v742 = vpop.permute.xlu0 %741
    %745 = vset.pattern.permute.xlu0 0
    %746 = vperm.xlu0 %745, %v628
    %v747 = vpop.permute.xlu0 %746
    %750 = vset.pattern.permute.xlu0 0
    %751 = vperm.xlu0 %750, %v629
    %v752 = vpop.permute.xlu0 %751
    %755 = vset.pattern.permute.xlu0 0
    %756 = vperm.xlu0 %755, %v630
    %v757 = vpop.permute.xlu0 %756
    %v759 = vsub.f32 %v205, %v682
    %v760 = vsub.f32 %v210, %v687
    %v761 = vsub.f32 %v215, %v692
    %v762 = vsub.f32 %v220, %v697
    %v763 = vsub.f32 %v225, %v702
    %v764 = vsub.f32 %v230, %v707
    %v765 = vsub.f32 %v235, %v712
    %v766 = vsub.f32 %v240, %v717
    %v767 = vsub.f32 %v245, %v722
    %v768 = vsub.f32 %v250, %v727
    %v769 = vsub.f32 %v255, %v732
    %v770 = vsub.f32 %v260, %v737
    %v771 = vsub.f32 %v265, %v742
    %v772 = vsub.f32 %v270, %v747
    %v773 = vsub.f32 %v275, %v752
    %v774 = vsub.f32 %v280, %v757
    %v775 = vmul.f32 %v759, 1.442695
    %v776 = vpow.pop %v775
    %v777 = vmul.f32 %v760, 1.442695
    %v778 = vpow.pop %v777
    %v779 = vmul.f32 %v761, 1.442695
    %v780 = vpow.pop %v779
    %v781 = vmul.f32 %v762, 1.442695
    %v782 = vpow.pop %v781
    %v783 = vmul.f32 %v763, 1.442695
    %v784 = vpow.pop %v783
    %v785 = vmul.f32 %v764, 1.442695
    %v786 = vpow.pop %v785
    %v787 = vmul.f32 %v765, 1.442695
    %v788 = vpow.pop %v787
    %v789 = vmul.f32 %v766, 1.442695
    %v790 = vpow.pop %v789
    %v791 = vmul.f32 %v767, 1.442695
    %v792 = vpow.pop %v791
    %v793 = vmul.f32 %v768, 1.442695
    %v794 = vpow.pop %v793
    %v795 = vmul.f32 %v769, 1.442695
    %v796 = vpow.pop %v795
    %v797 = vmul.f32 %v770, 1.442695
    %v798 = vpow.pop %v797
    %v799 = vmul.f32 %v771, 1.442695
    %v800 = vpow.pop %v799
    %v801 = vmul.f32 %v772, 1.442695
    %v802 = vpow.pop %v801
    %v803 = vmul.f32 %v773, 1.442695
    %v804 = vpow.pop %v803
    %v805 = vmul.f32 %v774, 1.442695
    %v806 = vpow.pop %v805
    %v807 = vld [vmem:[#allocation3] sm:$0xff]
    %v808 = vld [vmem:[#allocation3 + $0x8] sm:$0xff]
    %v809 = vld [vmem:[#allocation3 + $0x10] sm:$0xff]
    %v810 = vld [vmem:[#allocation3 + $0x18] sm:$0xff]
    %v811 = vld [vmem:[#allocation3 + $0x20] sm:$0xff]
    %v812 = vld [vmem:[#allocation3 + $0x28] sm:$0xff]
    %v813 = vld [vmem:[#allocation3 + $0x30] sm:$0xff]
    %v814 = vld [vmem:[#allocation3 + $0x38] sm:$0xff]
    %v815 = vld [vmem:[#allocation3 + $0x40] sm:$0xff]
    %v816 = vld [vmem:[#allocation3 + $0x48] sm:$0xff]
    %v817 = vld [vmem:[#allocation3 + $0x50] sm:$0xff]
    %v818 = vld [vmem:[#allocation3 + $0x58] sm:$0xff]
    %v819 = vld [vmem:[#allocation3 + $0x60] sm:$0xff]
    %v820 = vld [vmem:[#allocation3 + $0x68] sm:$0xff]
    %v821 = vld [vmem:[#allocation3 + $0x70] sm:$0xff]
    %v822 = vld [vmem:[#allocation3 + $0x78] sm:$0xff]
    %v823 = vmul.f32 %v648, %v807
    %v824 = vmul.f32 %v650, %v808
    %v825 = vmul.f32 %v652, %v809
    %v826 = vmul.f32 %v654, %v810
    %v827 = vmul.f32 %v656, %v811
    %v828 = vmul.f32 %v658, %v812
    %v829 = vmul.f32 %v660, %v813
    %v830 = vmul.f32 %v662, %v814
    %v831 = vmul.f32 %v664, %v815
    %v832 = vmul.f32 %v666, %v816
    %v833 = vmul.f32 %v668, %v817
    %v834 = vmul.f32 %v670, %v818
    %v835 = vmul.f32 %v672, %v819
    %v836 = vmul.f32 %v674, %v820
    %v837 = vmul.f32 %v676, %v821
    %v838 = vmul.f32 %v678, %v822
    %v839 = vmul.f32 %v551, %v776
    %v840 = vmul.f32 %v552, %v778
    %v841 = vmul.f32 %v553, %v780
    %v842 = vmul.f32 %v554, %v782
    %v843 = vmul.f32 %v555, %v784
    %v844 = vmul.f32 %v556, %v786
    %v845 = vmul.f32 %v557, %v788
    %v846 = vmul.f32 %v558, %v790
    %v847 = vmul.f32 %v559, %v792
    %v848 = vmul.f32 %v560, %v794
    %v849 = vmul.f32 %v561, %v796
    %v850 = vmul.f32 %v562, %v798
    %v851 = vmul.f32 %v563, %v800
    %v852 = vmul.f32 %v564, %v802
    %v853 = vmul.f32 %v565, %v804
    %v854 = vmul.f32 %v566, %v806
    %855 = vadd.xlane.f32.xlu0 %v839
    %v856 = vpop.xlane.xlu0 %855
    %857 = vadd.xlane.f32.xlu0 %v840
    %v858 = vpop.xlane.xlu0 %857
    %859 = vadd.xlane.f32.xlu0 %v841
    %v860 = vpop.xlane.xlu0 %859
    %861 = vadd.xlane.f32.xlu0 %v842
    %v862 = vpop.xlane.xlu0 %861
    %863 = vadd.xlane.f32.xlu0 %v843
    %v864 = vpop.xlane.xlu0 %863
    %865 = vadd.xlane.f32.xlu0 %v844
    %v866 = vpop.xlane.xlu0 %865
    %867 = vadd.xlane.f32.xlu0 %v845
    %v868 = vpop.xlane.xlu0 %867
    %869 = vadd.xlane.f32.xlu0 %v846
    %v870 = vpop.xlane.xlu0 %869
    %871 = vadd.xlane.f32.xlu0 %v847
    %v872 = vpop.xlane.xlu0 %871
    %873 = vadd.xlane.f32.xlu0 %v848
    %v874 = vpop.xlane.xlu0 %873
    %875 = vadd.xlane.f32.xlu0 %v849
    %v876 = vpop.xlane.xlu0 %875
    %877 = vadd.xlane.f32.xlu0 %v850
    %v878 = vpop.xlane.xlu0 %877
    %879 = vadd.xlane.f32.xlu0 %v851
    %v880 = vpop.xlane.xlu0 %879
    %881 = vadd.xlane.f32.xlu0 %v852
    %v882 = vpop.xlane.xlu0 %881
    %883 = vadd.xlane.f32.xlu0 %v853
    %v884 = vpop.xlane.xlu0 %883
    %885 = vadd.xlane.f32.xlu0 %v854
    %v886 = vpop.xlane.xlu0 %885
    %v887 = vadd.f32 %v823, %v856
    %v888 = vadd.f32 %v824, %v858
    %v889 = vadd.f32 %v825, %v860
    %v890 = vadd.f32 %v826, %v862
    %v891 = vadd.f32 %v827, %v864
    %v892 = vadd.f32 %v828, %v866
    %v893 = vadd.f32 %v829, %v868
    %v894 = vadd.f32 %v830, %v870
    %v895 = vadd.f32 %v831, %v872
    %v896 = vadd.f32 %v832, %v874
    %v897 = vadd.f32 %v833, %v876
    %v898 = vadd.f32 %v834, %v878
    %v899 = vadd.f32 %v835, %v880
    %v900 = vadd.f32 %v836, %v882
    %v901 = vadd.f32 %v837, %v884
    %v902 = vadd.f32 %v838, %v886
    %vm903 = vcmask 7168
    %904 = vst.msk [vmem:[#allocation3] sm:$0xff] %vm903, %v887
    %905 = vst.msk [vmem:[#allocation3 + $0x8] sm:$0xff] %vm903, %v888
    %906 = vst.msk [vmem:[#allocation3 + $0x10] sm:$0xff] %vm903, %v889
    %907 = vst.msk [vmem:[#allocation3 + $0x18] sm:$0xff] %vm903, %v890
    %908 = vst.msk [vmem:[#allocation3 + $0x20] sm:$0xff] %vm903, %v891
    %909 = vst.msk [vmem:[#allocation3 + $0x28] sm:$0xff] %vm903, %v892
    %910 = vst.msk [vmem:[#allocation3 + $0x30] sm:$0xff] %vm903, %v893
    %911 = vst.msk [vmem:[#allocation3 + $0x38] sm:$0xff] %vm903, %v894
    %912 = vst.msk [vmem:[#allocation3 + $0x40] sm:$0xff] %vm903, %v895
    %913 = vst.msk [vmem:[#allocation3 + $0x48] sm:$0xff] %vm903, %v896
    %914 = vst.msk [vmem:[#allocation3 + $0x50] sm:$0xff] %vm903, %v897
    %915 = vst.msk [vmem:[#allocation3 + $0x58] sm:$0xff] %vm903, %v898
    %916 = vst.msk [vmem:[#allocation3 + $0x60] sm:$0xff] %vm903, %v899
    %917 = vst.msk [vmem:[#allocation3 + $0x68] sm:$0xff] %vm903, %v900
    %918 = vst.msk [vmem:[#allocation3 + $0x70] sm:$0xff] %vm903, %v901
    %919 = vst.msk [vmem:[#allocation3 + $0x78] sm:$0xff] %vm903, %v902
    %920 = vst.msk [vmem:[#allocation2] sm:$0xff] %vm903, %v615
    %921 = vst.msk [vmem:[#allocation2 + $0x8] sm:$0xff] %vm903, %v616
    %922 = vst.msk [vmem:[#allocation2 + $0x10] sm:$0xff] %vm903, %v617
    %923 = vst.msk [vmem:[#allocation2 + $0x18] sm:$0xff] %vm903, %v618
    %924 = vst.msk [vmem:[#allocation2 + $0x20] sm:$0xff] %vm903, %v619
    %925 = vst.msk [vmem:[#allocation2 + $0x28] sm:$0xff] %vm903, %v620
    %926 = vst.msk [vmem:[#allocation2 + $0x30] sm:$0xff] %vm903, %v621
    %927 = vst.msk [vmem:[#allocation2 + $0x38] sm:$0xff] %vm903, %v622
    %928 = vst.msk [vmem:[#allocation2 + $0x40] sm:$0xff] %vm903, %v623
    %929 = vst.msk [vmem:[#allocation2 + $0x48] sm:$0xff] %vm903, %v624
    %930 = vst.msk [vmem:[#allocation2 + $0x50] sm:$0xff] %vm903, %v625
    %931 = vst.msk [vmem:[#allocation2 + $0x58] sm:$0xff] %vm903, %v626
    %932 = vst.msk [vmem:[#allocation2 + $0x60] sm:$0xff] %vm903, %v627
    %933 = vst.msk [vmem:[#allocation2 + $0x68] sm:$0xff] %vm903, %v628
    %934 = vst.msk [vmem:[#allocation2 + $0x70] sm:$0xff] %vm903, %v629
    %935 = vst.msk [vmem:[#allocation2 + $0x78] sm:$0xff] %vm903, %v630
    %v936 = vld [vmem:[#allocation4] sm:$0xff]
    %v937 = vld [vmem:[#allocation4 + $0x8] sm:$0xff]
    %v938 = vld [vmem:[#allocation4 + $0x10] sm:$0xff]
    %v939 = vld [vmem:[#allocation4 + $0x18] sm:$0xff]
    %v940 = vld [vmem:[#allocation4 + $0x20] sm:$0xff]
    %v941 = vld [vmem:[#allocation4 + $0x28] sm:$0xff]
    %v942 = vld [vmem:[#allocation4 + $0x30] sm:$0xff]
    %v943 = vld [vmem:[#allocation4 + $0x38] sm:$0xff]
    %v944 = vld [vmem:[#allocation4 + $0x40] sm:$0xff]
    %v945 = vld [vmem:[#allocation4 + $0x48] sm:$0xff]
    %v946 = vld [vmem:[#allocation4 + $0x50] sm:$0xff]
    %v947 = vld [vmem:[#allocation4 + $0x58] sm:$0xff]
    %v948 = vld [vmem:[#allocation4 + $0x60] sm:$0xff]
    %v949 = vld [vmem:[#allocation4 + $0x68] sm:$0xff]
    %v950 = vld [vmem:[#allocation4 + $0x70] sm:$0xff]
    %v951 = vld [vmem:[#allocation4 + $0x78] sm:$0xff]
    %v952 = vmul.f32 %v507, %v205
    %v953 = vmul.f32 %v508, %v210
    %v954 = vmul.f32 %v509, %v215
    %v955 = vmul.f32 %v510, %v220
    %v956 = vmul.f32 %v511, %v225
    %v957 = vmul.f32 %v512, %v230
    %v958 = vmul.f32 %v513, %v235
    %v959 = vmul.f32 %v514, %v240
    %v960 = vmul.f32 %v515, %v245
    %v961 = vmul.f32 %v516, %v250
    %v962 = vmul.f32 %v517, %v255
    %v963 = vmul.f32 %v518, %v260
    %v964 = vmul.f32 %v519, %v265
    %v965 = vmul.f32 %v520, %v270
    %v966 = vmul.f32 %v521, %v275
    %v967 = vmul.f32 %v522, %v280
    %968 = vadd.xlane.f32.xlu0 %v952
    %v969 = vpop.xlane.xlu0 %968
    %970 = vadd.xlane.f32.xlu0 %v953
    %v971 = vpop.xlane.xlu0 %970
    %972 = vadd.xlane.f32.xlu0 %v954
    %v973 = vpop.xlane.xlu0 %972
    %974 = vadd.xlane.f32.xlu0 %v955
    %v975 = vpop.xlane.xlu0 %974
    %976 = vadd.xlane.f32.xlu0 %v956
    %v977 = vpop.xlane.xlu0 %976
    %978 = vadd.xlane.f32.xlu0 %v957
    %v979 = vpop.xlane.xlu0 %978
    %980 = vadd.xlane.f32.xlu0 %v958
    %v981 = vpop.xlane.xlu0 %980
    %982 = vadd.xlane.f32.xlu0 %v959
    %v983 = vpop.xlane.xlu0 %982
    %984 = vadd.xlane.f32.xlu0 %v960
    %v985 = vpop.xlane.xlu0 %984
    %986 = vadd.xlane.f32.xlu0 %v961
    %v987 = vpop.xlane.xlu0 %986
    %988 = vadd.xlane.f32.xlu0 %v962
    %v989 = vpop.xlane.xlu0 %988
    %990 = vadd.xlane.f32.xlu0 %v963
    %v991 = vpop.xlane.xlu0 %990
    %992 = vadd.xlane.f32.xlu0 %v964
    %v993 = vpop.xlane.xlu0 %992
    %994 = vadd.xlane.f32.xlu0 %v965
    %v995 = vpop.xlane.xlu0 %994
    %996 = vadd.xlane.f32.xlu0 %v966
    %v997 = vpop.xlane.xlu0 %996
    %998 = vadd.xlane.f32.xlu0 %v967
    %v999 = vpop.xlane.xlu0 %998
    %v1000 = vadd.f32 %v936, %v969
    %v1001 = vadd.f32 %v937, %v971
    %v1002 = vadd.f32 %v938, %v973
    %v1003 = vadd.f32 %v939, %v975
    %v1004 = vadd.f32 %v940, %v977
    %v1005 = vadd.f32 %v941, %v979
    %v1006 = vadd.f32 %v942, %v981
    %v1007 = vadd.f32 %v943, %v983
    %v1008 = vadd.f32 %v944, %v985
    %v1009 = vadd.f32 %v945, %v987
    %v1010 = vadd.f32 %v946, %v989
    %v1011 = vadd.f32 %v947, %v991
    %v1012 = vadd.f32 %v948, %v993
    %v1013 = vadd.f32 %v949, %v995
    %v1014 = vadd.f32 %v950, %v997
    %v1015 = vadd.f32 %v951, %v999
    %1016 = vst.msk [vmem:[#allocation4] sm:$0xff] %vm903, %v1000
    %1017 = vst.msk [vmem:[#allocation4 + $0x8] sm:$0xff] %vm903, %v1001
    %1018 = vst.msk [vmem:[#allocation4 + $0x10] sm:$0xff] %vm903, %v1002
    %1019 = vst.msk [vmem:[#allocation4 + $0x18] sm:$0xff] %vm903, %v1003
    %1020 = vst.msk [vmem:[#allocation4 + $0x20] sm:$0xff] %vm903, %v1004
    %1021 = vst.msk [vmem:[#allocation4 + $0x28] sm:$0xff] %vm903, %v1005
    %1022 = vst.msk [vmem:[#allocation4 + $0x30] sm:$0xff] %vm903, %v1006
    %1023 = vst.msk [vmem:[#allocation4 + $0x38] sm:$0xff] %vm903, %v1007
    %1024 = vst.msk [vmem:[#allocation4 + $0x40] sm:$0xff] %vm903, %v1008
    %1025 = vst.msk [vmem:[#allocation4 + $0x48] sm:$0xff] %vm903, %v1009
    %1026 = vst.msk [vmem:[#allocation4 + $0x50] sm:$0xff] %vm903, %v1010
    %1027 = vst.msk [vmem:[#allocation4 + $0x58] sm:$0xff] %vm903, %v1011
    %1028 = vst.msk [vmem:[#allocation4 + $0x60] sm:$0xff] %vm903, %v1012
    %1029 = vst.msk [vmem:[#allocation4 + $0x68] sm:$0xff] %vm903, %v1013
    %1030 = vst.msk [vmem:[#allocation4 + $0x70] sm:$0xff] %vm903, %v1014
    %1031 = vst.msk [vmem:[#allocation4 + $0x78] sm:$0xff] %vm903, %v1015
    %v1032 = vld [vmem:[#allocation5] sm:$0xff]
    %v1033 = vld [vmem:[#allocation5 + $0x8] sm:$0xff]
    %v1034 = vld [vmem:[#allocation5 + $0x10] sm:$0xff]
    %v1035 = vld [vmem:[#allocation5 + $0x18] sm:$0xff]
    %v1036 = vld [vmem:[#allocation5 + $0x20] sm:$0xff]
    %v1037 = vld [vmem:[#allocation5 + $0x28] sm:$0xff]
    %v1038 = vld [vmem:[#allocation5 + $0x30] sm:$0xff]
    %v1039 = vld [vmem:[#allocation5 + $0x38] sm:$0xff]
    %v1040 = vld [vmem:[#allocation5 + $0x40] sm:$0xff]
    %v1041 = vld [vmem:[#allocation5 + $0x48] sm:$0xff]
    %v1042 = vld [vmem:[#allocation5 + $0x50] sm:$0xff]
    %v1043 = vld [vmem:[#allocation5 + $0x58] sm:$0xff]
    %v1044 = vld [vmem:[#allocation5 + $0x60] sm:$0xff]
    %v1045 = vld [vmem:[#allocation5 + $0x68] sm:$0xff]
    %v1046 = vld [vmem:[#allocation5 + $0x70] sm:$0xff]
    %v1047 = vld [vmem:[#allocation5 + $0x78] sm:$0xff]
    %1048 = vadd.xlane.f32.xlu0 %v507
    %v1049 = vpop.xlane.xlu0 %1048
    %1050 = vadd.xlane.f32.xlu0 %v508
    %v1051 = vpop.xlane.xlu0 %1050
    %1052 = vadd.xlane.f32.xlu0 %v509
    %v1053 = vpop.xlane.xlu0 %1052
    %1054 = vadd.xlane.f32.xlu0 %v510
    %v1055 = vpop.xlane.xlu0 %1054
    %1056 = vadd.xlane.f32.xlu0 %v511
    %v1057 = vpop.xlane.xlu0 %1056
    %1058 = vadd.xlane.f32.xlu0 %v512
    %v1059 = vpop.xlane.xlu0 %1058
    %1060 = vadd.xlane.f32.xlu0 %v513
    %v1061 = vpop.xlane.xlu0 %1060
    %1062 = vadd.xlane.f32.xlu0 %v514
    %v1063 = vpop.xlane.xlu0 %1062
    %1064 = vadd.xlane.f32.xlu0 %v515
    %v1065 = vpop.xlane.xlu0 %1064
    %1066 = vadd.xlane.f32.xlu0 %v516
    %v1067 = vpop.xlane.xlu0 %1066
    %1068 = vadd.xlane.f32.xlu0 %v517
    %v1069 = vpop.xlane.xlu0 %1068
    %1070 = vadd.xlane.f32.xlu0 %v518
    %v1071 = vpop.xlane.xlu0 %1070
    %1072 = vadd.xlane.f32.xlu0 %v519
    %v1073 = vpop.xlane.xlu0 %1072
    %1074 = vadd.xlane.f32.xlu0 %v520
    %v1075 = vpop.xlane.xlu0 %1074
    %1076 = vadd.xlane.f32.xlu0 %v521
    %v1077 = vpop.xlane.xlu0 %1076
    %1078 = vadd.xlane.f32.xlu0 %v522
    %v1079 = vpop.xlane.xlu0 %1078
    %v1080 = vadd.f32 %v1032, %v1049
    %v1081 = vadd.f32 %v1033, %v1051
    %v1082 = vadd.f32 %v1034, %v1053
    %v1083 = vadd.f32 %v1035, %v1055
    %v1084 = vadd.f32 %v1036, %v1057
    %v1085 = vadd.f32 %v1037, %v1059
    %v1086 = vadd.f32 %v1038, %v1061
    %v1087 = vadd.f32 %v1039, %v1063
    %v1088 = vadd.f32 %v1040, %v1065
    %v1089 = vadd.f32 %v1041, %v1067
    %v1090 = vadd.f32 %v1042, %v1069
    %v1091 = vadd.f32 %v1043, %v1071
    %v1092 = vadd.f32 %v1044, %v1073
    %v1093 = vadd.f32 %v1045, %v1075
    %v1094 = vadd.f32 %v1046, %v1077
    %v1095 = vadd.f32 %v1047, %v1079
    %1096 = vst.msk [vmem:[#allocation5] sm:$0xff] %vm903, %v1080
    %1097 = vst.msk [vmem:[#allocation5 + $0x8] sm:$0xff] %vm903, %v1081
    %1098 = vst.msk [vmem:[#allocation5 + $0x10] sm:$0xff] %vm903, %v1082
    %1099 = vst.msk [vmem:[#allocation5 + $0x18] sm:$0xff] %vm903, %v1083
    %1100 = vst.msk [vmem:[#allocation5 + $0x20] sm:$0xff] %vm903, %v1084
    %1101 = vst.msk [vmem:[#allocation5 + $0x28] sm:$0xff] %vm903, %v1085
    %1102 = vst.msk [vmem:[#allocation5 + $0x30] sm:$0xff] %vm903, %v1086
    %1103 = vst.msk [vmem:[#allocation5 + $0x38] sm:$0xff] %vm903, %v1087
    %1104 = vst.msk [vmem:[#allocation5 + $0x40] sm:$0xff] %vm903, %v1088
    %1105 = vst.msk [vmem:[#allocation5 + $0x48] sm:$0xff] %vm903, %v1089
    %1106 = vst.msk [vmem:[#allocation5 + $0x50] sm:$0xff] %vm903, %v1090
    %1107 = vst.msk [vmem:[#allocation5 + $0x58] sm:$0xff] %vm903, %v1091
    %1108 = vst.msk [vmem:[#allocation5 + $0x60] sm:$0xff] %vm903, %v1092
    %1109 = vst.msk [vmem:[#allocation5 + $0x68] sm:$0xff] %vm903, %v1093
    %1110 = vst.msk [vmem:[#allocation5 + $0x70] sm:$0xff] %vm903, %v1094
    %1111 = vst.msk [vmem:[#allocation5 + $0x78] sm:$0xff] %vm903, %v1095
    // Predicated region
    $region34: #{tpu_custom_call.1} parent=1 // pred_check
      %p1112 = pneg %p37
    $region35: #{tpu_custom_call.1} parent=1 // pred_check_branch
      %1114 = sbr.rel (%p1112) target = $region37
    $region36: #{tpu_custom_call.1} parent=1 // pred_region
      %v1115 = vld [vmem:[#allocation5] sm:$0xff]
      %v1116 = vld [vmem:[#allocation5 + $0x8] sm:$0xff]
      %v1117 = vld [vmem:[#allocation5 + $0x10] sm:$0xff]
      %v1118 = vld [vmem:[#allocation5 + $0x18] sm:$0xff]
      %v1119 = vld [vmem:[#allocation5 + $0x20] sm:$0xff]
      %v1120 = vld [vmem:[#allocation5 + $0x28] sm:$0xff]
      %v1121 = vld [vmem:[#allocation5 + $0x30] sm:$0xff]
      %v1122 = vld [vmem:[#allocation5 + $0x38] sm:$0xff]
      %v1123 = vld [vmem:[#allocation5 + $0x40] sm:$0xff]
      %v1124 = vld [vmem:[#allocation5 + $0x48] sm:$0xff]
      %v1125 = vld [vmem:[#allocation5 + $0x50] sm:$0xff]
      %v1126 = vld [vmem:[#allocation5 + $0x58] sm:$0xff]
      %v1127 = vld [vmem:[#allocation5 + $0x60] sm:$0xff]
      %v1128 = vld [vmem:[#allocation5 + $0x68] sm:$0xff]
      %v1129 = vld [vmem:[#allocation5 + $0x70] sm:$0xff]
      %v1130 = vld [vmem:[#allocation5 + $0x78] sm:$0xff]
      %v1131 = vmax.f32 %v1115, 1.0
      %v1132 = vmax.f32 %v1116, 1.0
      %v1133 = vmax.f32 %v1117, 1.0
      %v1134 = vmax.f32 %v1118, 1.0
      %v1135 = vmax.f32 %v1119, 1.0
      %v1136 = vmax.f32 %v1120, 1.0
      %v1137 = vmax.f32 %v1121, 1.0
      %v1138 = vmax.f32 %v1122, 1.0
      %v1139 = vmax.f32 %v1123, 1.0
      %v1140 = vmax.f32 %v1124, 1.0
      %v1141 = vmax.f32 %v1125, 1.0
      %v1142 = vmax.f32 %v1126, 1.0
      %v1143 = vmax.f32 %v1127, 1.0
      %v1144 = vmax.f32 %v1128, 1.0
      %v1145 = vmax.f32 %v1129, 1.0
      %v1146 = vmax.f32 %v1130, 1.0
      %v1147 = vld [vmem:[#allocation4] sm:$0xff]
      %v1148 = vld [vmem:[#allocation4 + $0x8] sm:$0xff]
      %v1149 = vld [vmem:[#allocation4 + $0x10] sm:$0xff]
      %v1150 = vld [vmem:[#allocation4 + $0x18] sm:$0xff]
      %v1151 = vld [vmem:[#allocation4 + $0x20] sm:$0xff]
      %v1152 = vld [vmem:[#allocation4 + $0x28] sm:$0xff]
      %v1153 = vld [vmem:[#allocation4 + $0x30] sm:$0xff]
      %v1154 = vld [vmem:[#allocation4 + $0x38] sm:$0xff]
      %v1155 = vld [vmem:[#allocation4 + $0x40] sm:$0xff]
      %v1156 = vld [vmem:[#allocation4 + $0x48] sm:$0xff]
      %v1157 = vld [vmem:[#allocation4 + $0x50] sm:$0xff]
      %v1158 = vld [vmem:[#allocation4 + $0x58] sm:$0xff]
      %v1159 = vld [vmem:[#allocation4 + $0x60] sm:$0xff]
      %v1160 = vld [vmem:[#allocation4 + $0x68] sm:$0xff]
      %v1161 = vld [vmem:[#allocation4 + $0x70] sm:$0xff]
      %v1162 = vld [vmem:[#allocation4 + $0x78] sm:$0xff]
      %v1163 = vrcp.pop %v1131
      %v1164 = vmul.f32 %v1147, %v1163
      %v1165 = vrcp.pop %v1132
      %v1166 = vmul.f32 %v1148, %v1165
      %v1167 = vrcp.pop %v1133
      %v1168 = vmul.f32 %v1149, %v1167
      %v1169 = vrcp.pop %v1134
      %v1170 = vmul.f32 %v1150, %v1169
      %v1171 = vrcp.pop %v1135
      %v1172 = vmul.f32 %v1151, %v1171
      %v1173 = vrcp.pop %v1136
      %v1174 = vmul.f32 %v1152, %v1173
      %v1175 = vrcp.pop %v1137
      %v1176 = vmul.f32 %v1153, %v1175
      %v1177 = vrcp.pop %v1138
      %v1178 = vmul.f32 %v1154, %v1177
      %v1179 = vrcp.pop %v1139
      %v1180 = vmul.f32 %v1155, %v1179
      %v1181 = vrcp.pop %v1140
      %v1182 = vmul.f32 %v1156, %v1181
      %v1183 = vrcp.pop %v1141
      %v1184 = vmul.f32 %v1157, %v1183
      %v1185 = vrcp.pop %v1142
      %v1186 = vmul.f32 %v1158, %v1185
      %v1187 = vrcp.pop %v1143
      %v1188 = vmul.f32 %v1159, %v1187
      %v1189 = vrcp.pop %v1144
      %v1190 = vmul.f32 %v1160, %v1189
      %v1191 = vrcp.pop %v1145
      %v1192 = vmul.f32 %v1161, %v1191
      %v1193 = vrcp.pop %v1146
      %v1194 = vmul.f32 %v1162, %v1193
      %v1195 = vld [vmem:[#allocation2] sm:$0xff]
      %v1196 = vld [vmem:[#allocation2 + $0x8] sm:$0xff]
      %v1197 = vld [vmem:[#allocation2 + $0x10] sm:$0xff]
      %v1198 = vld [vmem:[#allocation2 + $0x18] sm:$0xff]
      %v1199 = vld [vmem:[#allocation2 + $0x20] sm:$0xff]
      %v1200 = vld [vmem:[#allocation2 + $0x28] sm:$0xff]
      %v1201 = vld [vmem:[#allocation2 + $0x30] sm:$0xff]
      %v1202 = vld [vmem:[#allocation2 + $0x38] sm:$0xff]
      %v1203 = vld [vmem:[#allocation2 + $0x40] sm:$0xff]
      %v1204 = vld [vmem:[#allocation2 + $0x48] sm:$0xff]
      %v1205 = vld [vmem:[#allocation2 + $0x50] sm:$0xff]
      %v1206 = vld [vmem:[#allocation2 + $0x58] sm:$0xff]
      %v1207 = vld [vmem:[#allocation2 + $0x60] sm:$0xff]
      %v1208 = vld [vmem:[#allocation2 + $0x68] sm:$0xff]
      %v1209 = vld [vmem:[#allocation2 + $0x70] sm:$0xff]
      %v1210 = vld [vmem:[#allocation2 + $0x78] sm:$0xff]
      %v1211 = vsub.f32 %v1164, %v1195
      %v1212 = vsub.f32 %v1166, %v1196
      %v1213 = vsub.f32 %v1168, %v1197
      %v1214 = vsub.f32 %v1170, %v1198
      %v1215 = vsub.f32 %v1172, %v1199
      %v1216 = vsub.f32 %v1174, %v1200
      %v1217 = vsub.f32 %v1176, %v1201
      %v1218 = vsub.f32 %v1178, %v1202
      %v1219 = vsub.f32 %v1180, %v1203
      %v1220 = vsub.f32 %v1182, %v1204
      %v1221 = vsub.f32 %v1184, %v1205
      %v1222 = vsub.f32 %v1186, %v1206
      %v1223 = vsub.f32 %v1188, %v1207
      %v1224 = vsub.f32 %v1190, %v1208
      %v1225 = vsub.f32 %v1192, %v1209
      %v1226 = vsub.f32 %v1194, %v1210
      %v1227 = vld [vmem:[#allocation3] sm:$0xff]
      %v1228 = vld [vmem:[#allocation3 + $0x8] sm:$0xff]
      %v1229 = vld [vmem:[#allocation3 + $0x10] sm:$0xff]
      %v1230 = vld [vmem:[#allocation3 + $0x18] sm:$0xff]
      %v1231 = vld [vmem:[#allocation3 + $0x20] sm:$0xff]
      %v1232 = vld [vmem:[#allocation3 + $0x28] sm:$0xff]
      %v1233 = vld [vmem:[#allocation3 + $0x30] sm:$0xff]
      %v1234 = vld [vmem:[#allocation3 + $0x38] sm:$0xff]
      %v1235 = vld [vmem:[#allocation3 + $0x40] sm:$0xff]
      %v1236 = vld [vmem:[#allocation3 + $0x48] sm:$0xff]
      %v1237 = vld [vmem:[#allocation3 + $0x50] sm:$0xff]
      %v1238 = vld [vmem:[#allocation3 + $0x58] sm:$0xff]
      %v1239 = vld [vmem:[#allocation3 + $0x60] sm:$0xff]
      %v1240 = vld [vmem:[#allocation3 + $0x68] sm:$0xff]
      %v1241 = vld [vmem:[#allocation3 + $0x70] sm:$0xff]
      %v1242 = vld [vmem:[#allocation3 + $0x78] sm:$0xff]
      %v1243 = vlog2.pop %v1227
      %v1244 = vmul.f32 %v1243, 0.6931472
      %v1245 = vlog2.pop %v1228
      %v1246 = vmul.f32 %v1245, 0.6931472
      %v1247 = vlog2.pop %v1229
      %v1248 = vmul.f32 %v1247, 0.6931472
      %v1249 = vlog2.pop %v1230
      %v1250 = vmul.f32 %v1249, 0.6931472
      %v1251 = vlog2.pop %v1231
      %v1252 = vmul.f32 %v1251, 0.6931472
      %v1253 = vlog2.pop %v1232
      %v1254 = vmul.f32 %v1253, 0.6931472
      %v1255 = vlog2.pop %v1233
      %v1256 = vmul.f32 %v1255, 0.6931472
      %v1257 = vlog2.pop %v1234
      %v1258 = vmul.f32 %v1257, 0.6931472
      %v1259 = vlog2.pop %v1235
      %v1260 = vmul.f32 %v1259, 0.6931472
      %v1261 = vlog2.pop %v1236
      %v1262 = vmul.f32 %v1261, 0.6931472
      %v1263 = vlog2.pop %v1237
      %v1264 = vmul.f32 %v1263, 0.6931472
      %v1265 = vlog2.pop %v1238
      %v1266 = vmul.f32 %v1265, 0.6931472
      %v1267 = vlog2.pop %v1239
      %v1268 = vmul.f32 %v1267, 0.6931472
      %v1269 = vlog2.pop %v1240
      %v1270 = vmul.f32 %v1269, 0.6931472
      %v1271 = vlog2.pop %v1241
      %v1272 = vmul.f32 %v1271, 0.6931472
      %v1273 = vlog2.pop %v1242
      %v1274 = vmul.f32 %v1273, 0.6931472
      %v1275 = vsub.f32 %v1211, %v1244
      %v1276 = vsub.f32 %v1212, %v1246
      %v1277 = vsub.f32 %v1213, %v1248
      %v1278 = vsub.f32 %v1214, %v1250
      %v1279 = vsub.f32 %v1215, %v1252
      %v1280 = vsub.f32 %v1216, %v1254
      %v1281 = vsub.f32 %v1217, %v1256
      %v1282 = vsub.f32 %v1218, %v1258
      %v1283 = vsub.f32 %v1219, %v1260
      %v1284 = vsub.f32 %v1220, %v1262
      %v1285 = vsub.f32 %v1221, %v1264
      %v1286 = vsub.f32 %v1222, %v1266
      %v1287 = vsub.f32 %v1223, %v1268
      %v1288 = vsub.f32 %v1224, %v1270
      %v1289 = vsub.f32 %v1225, %v1272
      %v1290 = vsub.f32 %v1226, %v1274
      %v1291 = vsub.f32 0.0, %v1275
      %v1292 = vsub.f32 0.0, %v1276
      %v1293 = vsub.f32 0.0, %v1277
      %v1294 = vsub.f32 0.0, %v1278
      %v1295 = vsub.f32 0.0, %v1279
      %v1296 = vsub.f32 0.0, %v1280
      %v1297 = vsub.f32 0.0, %v1281
      %v1298 = vsub.f32 0.0, %v1282
      %v1299 = vsub.f32 0.0, %v1283
      %v1300 = vsub.f32 0.0, %v1284
      %v1301 = vsub.f32 0.0, %v1285
      %v1302 = vsub.f32 0.0, %v1286
      %v1303 = vsub.f32 0.0, %v1287
      %v1304 = vsub.f32 0.0, %v1288
      %v1305 = vsub.f32 0.0, %v1289
      %v1306 = vsub.f32 0.0, %v1290
      %1307 = vst.msk [vmem:[%s6] sm:$0xff] %vm903, %v1291
      %1308 = vst.msk [vmem:[%s6 + $0x8] sm:$0xff] %vm903, %v1292
      %1309 = vst.msk [vmem:[%s6 + $0x10] sm:$0xff] %vm903, %v1293
      %1310 = vst.msk [vmem:[%s6 + $0x18] sm:$0xff] %vm903, %v1294
      %1311 = vst.msk [vmem:[%s6 + $0x20] sm:$0xff] %vm903, %v1295
      %1312 = vst.msk [vmem:[%s6 + $0x28] sm:$0xff] %vm903, %v1296
      %1313 = vst.msk [vmem:[%s6 + $0x30] sm:$0xff] %vm903, %v1297
      %1314 = vst.msk [vmem:[%s6 + $0x38] sm:$0xff] %vm903, %v1298
      %1315 = vst.msk [vmem:[%s6 + $0x40] sm:$0xff] %vm903, %v1299
      %1316 = vst.msk [vmem:[%s6 + $0x48] sm:$0xff] %vm903, %v1300
      %1317 = vst.msk [vmem:[%s6 + $0x50] sm:$0xff] %vm903, %v1301
      %1318 = vst.msk [vmem:[%s6 + $0x58] sm:$0xff] %vm903, %v1302
      %1319 = vst.msk [vmem:[%s6 + $0x60] sm:$0xff] %vm903, %v1303
      %1320 = vst.msk [vmem:[%s6 + $0x68] sm:$0xff] %vm903, %v1304
      %1321 = vst.msk [vmem:[%s6 + $0x70] sm:$0xff] %vm903, %v1305
      %1322 = vst.msk [vmem:[%s6 + $0x78] sm:$0xff] %vm903, %v1306
    $region37: #{tpu_custom_call.1} parent=1 // pred_fallthru
      _
    // Predicated region
    $region38: #{tpu_custom_call.1} parent=1 // pred_check
      _
    $region39: #{tpu_custom_call.1} parent=1 // pred_check_branch
      %1324 = sbr.rel (0) target = $region41
    $region40: #{tpu_custom_call.1} parent=1 // pred_region
      _
    $region41: #{tpu_custom_call.1} parent=1 // pred_fallthru
      _
    // Predicated region
    $region42: #{tpu_custom_call.1} parent=1 // pred_check
      _
    $region43: #{tpu_custom_call.1} parent=1 // pred_check_branch
      %1326 = sbr.rel (0) target = $region45
    $region44: #{tpu_custom_call.1} parent=1 // pred_region
      _
    $region45: #{tpu_custom_call.1} parent=1 // pred_fallthru
      _
    %1327 = vsyncpa [#allocation7], 1

</llo_original>
